<compile_context>
chip_gen: v7x
topology: tpu7x:2x2x1
jax: 0.10.0
libtpu: 0.0.40
codegen_flags: <defaults>
</compile_context>

<pallas_src>
import numpy as np
import jax
import jax.numpy as jnp
from jax import lax
from jax.experimental import pallas as pl
from jax.experimental.pallas import tpu as pltpu


# Conv matmul input dtype (accumulation is always f32).  bf16 is MXU-native on
# v5e/v6e/v7x and halves VMEM/DMA bytes; use jnp.float32 for strict accuracy.
_MXU_DTYPE = jnp.bfloat16
_BN_EPS = 1e-5


# ---------------------------------------------------------------------------
# Fused Pallas kernel
# ---------------------------------------------------------------------------
def up_double_conv_kernel(x1_ref, x2p_ref, uwt_ref, uhb_ref, wb1_ref, wb2_ref,
                          m1_ref, gb_ref, o_ref, xp2_ref):
    # x1_ref : (N*H1, W1*C1)        x1 in row-flattened NHWC
    # x2p_ref: (N, H+2, W*C2)       x2 (H-halo pre-padded) row-flattened NHWC
    # uwt_ref: (W1*C1, W*C1)        kron(Uw, I_C1)^T  (W upsample + F.pad)
    # uhb_ref: (N*(H+2), N*H1)      blockdiag_N(Uh)   (H upsample + F.pad + halo)
    # wb1/wb2: (3*W*SumCi, W*Cout)  banded im2col conv weights (bf16)
    # m1_ref : (W*Cout, W*Cout)     per-channel averaging matrix (lane-tiled)
    # gb_ref : (4, W*Cout)          lane-tiled [gamma1, beta1, gamma2, beta2]
    # o_ref  : (N*H, W*Cout)        final activations, row-flattened NHWC
    # xp2_ref: (N, H+2, W*Cout)     VMEM scratch: H-halo for conv2's input
    n, hp, _ = x2p_ref.shape
    h = hp - 2
    nh = n * h
    wco = o_ref.shape[1]
    f32 = jnp.float32

    # ---- bilinear upsample + F.pad + conv halo: two lane-dense matmuls ------
    bw = jnp.dot(x1_ref[...], uwt_ref[...], preferred_element_type=f32)   # (N*H1, W*C1)
    up3 = jnp.dot(uhb_ref[...], bw,
                  preferred_element_type=f32).reshape(n, hp, -1)          # (N, H+2, W*C1)
    x2p = x2p_ref[...]
    m1 = m1_ref[...]
    gb = gb_ref[...]

    def conv_bn_relu(pieces, wb_ref, g_row, b_row):
        # pieces: row-shifted (N*H, W*Ci) slices (halo rows already zero); their
        # lane-concat is the "row im2col" patch -> one MXU matmul per conv.
        patch = jnp.concatenate(pieces, axis=-1).astype(wb_ref.dtype)
        y = jnp.dot(patch, wb_ref[...], preferred_element_type=f32)       # (N*H, W*Cout)
        # Train-mode BN: per-channel batch stats (lane-tiled via constant m1),
        # folded to a per-lane scale/shift and fused with ReLU.
        mean = jnp.sum(jnp.dot(y, m1, preferred_element_type=f32),
                       axis=0, keepdims=True) * (1.0 / nh)
        ex2 = jnp.sum(jnp.dot(y * y, m1, preferred_element_type=f32),
                      axis=0, keepdims=True) * (1.0 / nh)
        inv = lax.rsqrt(ex2 - mean * mean + _BN_EPS)
        a = gb[g_row:g_row + 1, :] * inv
        b = gb[b_row:b_row + 1, :] - mean * a
        return jnp.maximum(y * a + b, 0.0)

    # conv1 over the (virtually channel-concatenated) [x2, upsampled x1].
    pieces1 = []
    for kh in range(3):
        pieces1.append(x2p[:, kh:kh + h, :].reshape(nh, -1))
        pieces1.append(up3[:, kh:kh + h, :].reshape(nh, -1))
    y1 = conv_bn_relu(pieces1, wb1_ref, 0, 1)

    # conv2: H halo for y1 via a small VMEM scratch.  Only the 2 border rows are
    # zeroed (once); the interior is fully overwritten with full-lane stores.
    zrow = jnp.zeros((n, 1, wco), f32)
    xp2_ref[:, 0:1, :] = zrow
    xp2_ref[:, hp - 1:hp, :] = zrow
    xp2_ref[:, 1:h + 1, :] = y1.reshape(n, h, wco)
    xp2 = xp2_ref[...]
    pieces2 = [xp2[:, kh:kh + h, :].reshape(nh, wco) for kh in range(3)]
    o_ref[...] = conv_bn_relu(pieces2, wb2_ref, 2, 3)


# ---------------------------------------------------------------------------
# Wrapper
# ---------------------------------------------------------------------------
def _interp_matrix(out_size, in_size, pad_before, full_out):
    """align_corners=True bilinear interp matrix, placed at row offset pad_before."""
    m = np.zeros((full_out, in_size), np.float32)
    if out_size == 1:
        m[pad_before, 0] = 1.0
        return m
    scale = (in_size - 1) / (out_size - 1)
    for i in range(out_size):
        src = i * scale
        i0 = min(int(np.floor(src)), in_size - 1)
        frac = src - i0
        i1 = min(i0 + 1, in_size - 1)
        m[pad_before + i, i0] += 1.0 - frac
        m[pad_before + i, i1] += frac
    return m


def _band_blocks(w_t, shift):
    """(Cout, Ci, 3, 3) conv weight -> 3 banded (W*Ci, W*Cout) matrices (per kh).
    The 3 kw taps and the W zero-padding are folded into the band structure."""
    cout, ci = w_t.shape[0], w_t.shape[1]
    w = shift.shape[1]
    blocks = []
    for kh in range(3):
        a = jnp.transpose(w_t[:, :, kh, :], (1, 0, 2))          # (Ci, Cout, kw)
        blk = jnp.einsum("kpq,ick->piqc", shift, a)              # (W, Ci, W, Cout)
        blocks.append(blk.reshape(w * ci, w * cout))
    return blocks


def up_forward(x1, x2, params):
    """up.forward(x1, x2): upsample+pad x1, cat([x2, x1], C), double_conv."""
    n, c1, h_in, w_in = x1.shape
    _, c2, H, W = x2.shape
    cout = params["w1"].shape[0]
    hp = H + 2
    diff_x, diff_y = H - 2 * h_in, W - 2 * w_in
    # TODO(synk): negative diff (crop) branch of the PyTorch F.pad is unsupported.
    assert diff_x >= 0 and diff_y >= 0

    # ---- constants (numpy, depend only on static shapes) --------------------
    uw = _interp_matrix(2 * w_in, w_in, diff_y // 2, W)              # (W, w_in)
    uh = _interp_matrix(2 * h_in, h_in, 1 + diff_x // 2, hp)         # (H+2, h_in), halo rows zero
    uwt = jnp.asarray(np.kron(uw, np.eye(c1, dtype=np.float32)).T)   # (w_in*c1, W*c1)
    uhb = jnp.asarray(np.kron(np.eye(n, dtype=np.float32), uh))      # (n*(H+2), n*h_in)
    m1 = jnp.asarray(np.kron(np.ones((W, W), np.float32) / W,
                             np.eye(cout, dtype=np.float32)))         # (W*cout, W*cout)
    shift = np.zeros((3, W, W), np.float32)                           # [kw, w', w] = (w' == w+kw-1)
    for kw in range(3):
        for wq in range(W):
            if 0 <= wq + kw - 1 < W:
                shift[kw, wq + kw - 1, wq] = 1.0
    shift = jnp.asarray(shift)

    # ---- tiny XLA glue: activations -> row-flattened channels-last ----------
    x1r = jnp.transpose(x1, (0, 2, 3, 1)).reshape(n * h_in, w_in * c1)
    x2r = jnp.pad(jnp.transpose(x2, (0, 2, 3, 1)),
                  ((0, 0), (1, 1), (0, 0), (0, 0))).reshape(n, hp, W * c2)

    # ---- banded im2col weights (conv bias dropped: cancels under train BN) --
    # TODO(synk): the banded weights scale as O(W^2*Ci*Cout); for real UNet
    # feature maps switch to per-pixel im2col + H-row-block tiling on a
    # "parallel" grid (keeps v7x's 2 TCs busy and VMEM under 64 MiB).
    w1a, w1b = params["w1"][:, :c2], params["w1"][:, c2:]
    bx2 = _band_blocks(w1a, shift)
    bx1 = _band_blocks(w1b, shift)
    by = _band_blocks(params["w2"], shift)
    wb1 = jnp.concatenate(
        [jnp.concatenate([bx2[kh], bx1[kh]], axis=0) for kh in range(3)],
        axis=0).astype(_MXU_DTYPE)                                    # (3*W*(c2+c1), W*cout)
    wb2 = jnp.concatenate(by, axis=0).astype(_MXU_DTYPE)              # (3*W*cout, W*cout)

    gb = jnp.stack([jnp.tile(params["g1"], W), jnp.tile(params["be1"], W),
                    jnp.tile(params["g2"], W), jnp.tile(params["be2"], W)])   # (4, W*cout)

    out2d = pl.pallas_call(
        up_double_conv_kernel,
        out_shape=jax.ShapeDtypeStruct((n * H, W * cout), jnp.float32),
        grid=(1,),
        in_specs=[
            pl.BlockSpec(x1r.shape, lambda i: (0, 0)),
            pl.BlockSpec(x2r.shape, lambda i: (0, 0, 0)),
            pl.BlockSpec(uwt.shape, lambda i: (0, 0)),
            pl.BlockSpec(uhb.shape, lambda i: (0, 0)),
            pl.BlockSpec(wb1.shape, lambda i: (0, 0)),
            pl.BlockSpec(wb2.shape, lambda i: (0, 0)),
            pl.BlockSpec(m1.shape, lambda i: (0, 0)),
            pl.BlockSpec(gb.shape, lambda i: (0, 0)),
        ],
        out_specs=pl.BlockSpec((n * H, W * cout), lambda i: (0, 0)),
        scratch_shapes=[pltpu.VMEM((n, hp, W * cout), jnp.float32)],
        compiler_params=pltpu.CompilerParams(dimension_semantics=("arbitrary",)),
    )(x1r, x2r, uwt, uhb, wb1, wb2, m1, gb)

    return jnp.transpose(out2d.reshape(n, H, W, cout), (0, 3, 1, 2))


# ---------------------------------------------------------------------------
# Pure numpy reference (mirrors the PyTorch forward, train-mode BN, with bias)
# ---------------------------------------------------------------------------
def torch_like_reference(x1, x2, p):
    x1 = np.asarray(x1, np.float64)
    x2 = np.asarray(x2, np.float64)
    n, c1, h1, w1 = x1.shape
    h_up, w_up = 2 * h1, 2 * w1
    up = np.zeros((n, c1, h_up, w_up))
    for i in range(h_up):
        sh = i * (h1 - 1) / (h_up - 1)
        h0 = min(int(np.floor(sh)), h1 - 1)
        fh = sh - h0
        h1i = min(h0 + 1, h1 - 1)
        for j in range(w_up):
            sw = j * (w1 - 1) / (w_up - 1)
            w0 = min(int(np.floor(sw)), w1 - 1)
            fw = sw - w0
            w1i = min(w0 + 1, w1 - 1)
            up[:, :, i, j] = ((1 - fh) * (1 - fw) * x1[:, :, h0, w0]
                              + (1 - fh) * fw * x1[:, :, h0, w1i]
                              + fh * (1 - fw) * x1[:, :, h1i, w0]
                              + fh * fw * x1[:, :, h1i, w1i])
    hx, wx = x2.shape[2], x2.shape[3]
    dx, dy = hx - h_up, wx - w_up
    up = np.pad(up, ((0, 0), (0, 0), (dx // 2, dx - dx // 2), (dy // 2, dy - dy // 2)))
    x = np.concatenate([x2, up], axis=1)

    def conv_bn_relu(x, w, b, g, be):
        nn_, ci, h, wd = x.shape
        co = w.shape[0]
        xp = np.pad(x, ((0, 0), (0, 0), (1, 1), (1, 1)))
        out = np.zeros((nn_, co, h, wd))
        for kh in range(3):
            for kw in range(3):
                out += np.einsum("ncij,oc->noij",
                                 xp[:, :, kh:kh + h, kw:kw + wd], w[:, :, kh, kw])
        out += b[None, :, None, None]
        mean = out.mean(axis=(0, 2, 3), keepdims=True)
        var = out.var(axis=(0, 2, 3), keepdims=True)  # biased, as in BN train mode
        out = (out - mean) / np.sqrt(var + 1e-5) * g[None, :, None, None] \
            + be[None, :, None, None]
        return np.maximum(out, 0.0)

    f64 = lambda k: np.asarray(p[k], np.float64)
    y = conv_bn_relu(x, f64("w1"), f64("b1"), f64("g1"), f64("be1"))
    y = conv_bn_relu(y, f64("w2"), f64("b2"), f64("g2"), f64("be2"))
    return y


# ---------------------------------------------------------------------------
if __name__ == "__main__":
    key = jax.random.PRNGKey(0)
    ks = jax.random.split(key, 10)
    n, in_ch, out_ch = 2, 8, 4
    c1 = c2 = in_ch // 2
    h1 = w1 = 8
    hx = wx = 16

    x1 = jax.random.normal(ks[0], (n, c1, h1, w1), jnp.float32)
    x2 = jax.random.normal(ks[1], (n, c2, hx, wx), jnp.float32)
    params = {
        "w1": 0.2 * jax.random.normal(ks[2], (out_ch, in_ch, 3, 3), jnp.float32),
        "b1": 0.1 * jax.random.normal(ks[3], (out_ch,), jnp.float32),
        "g1": 1.0 + 0.1 * jax.random.normal(ks[4], (out_ch,), jnp.float32),
        "be1": 0.1 * jax.random.normal(ks[5], (out_ch,), jnp.float32),
        "w2": 0.2 * jax.random.normal(ks[6], (out_ch, out_ch, 3, 3), jnp.float32),
        "b2": 0.1 * jax.random.normal(ks[7], (out_ch,), jnp.float32),
        "g2": 1.0 + 0.1 * jax.random.normal(ks[8], (out_ch,), jnp.float32),
        "be2": 0.1 * jax.random.normal(ks[9], (out_ch,), jnp.float32),
    }

    out = jax.jit(up_forward)(x1, x2, params)
    out = jax.block_until_ready(out)

    ref = torch_like_reference(x1, x2, params)
    assert out.shape == (n, out_ch, hx, wx), out.shape
    err = float(np.max(np.abs(np.asarray(out, np.float64) - ref)))
    # bf16 conv inputs (f32 accumulation) -> looser tolerance; f32 path: <2e-3.
    tol = 2e-3 if _MXU_DTYPE is jnp.float32 else 5e-2
    assert err < tol, f"max abs err {err}"
    print("KERNEL_OK")
</pallas_src>

<mosaic_0001>
module attributes {stable_mosaic.version = 11 : i64} {
  func.func @up_double_conv_kernel(%arg0: i32, %arg1: memref<16x32xf32, #tpu.memory_space<vmem>>, %arg2: memref<2x18x64xf32, #tpu.memory_space<vmem>>, %arg3: memref<32x64xf32, #tpu.memory_space<vmem>>, %arg4: memref<36x16xf32, #tpu.memory_space<vmem>>, %arg5: memref<384x64xbf16, #tpu.memory_space<vmem>>, %arg6: memref<192x64xbf16, #tpu.memory_space<vmem>>, %arg7: memref<64x64xf32, #tpu.memory_space<vmem>>, %arg8: memref<4x64xf32, #tpu.memory_space<vmem>>, %arg9: memref<32x64xf32, #tpu.memory_space<vmem>>, %arg10: memref<2x18x64xf32, #tpu.memory_space<vmem>>) attributes {dimension_semantics = [#tpu.dimension_semantics<arbitrary>], iteration_bounds = array<i64: 1>, scalar_prefetch = 0 : i64, scratch_operands = 1 : i64, tpu.core_type = #tpu.core_type<tc>, window_params = [{pipeline_mode = #tpu.pipeline_mode<synchronous>, transform_indices = @transform_0, window_bounds = array<i64: 16, 32>}, {pipeline_mode = #tpu.pipeline_mode<synchronous>, transform_indices = @transform_1, window_bounds = array<i64: 2, 18, 64>}, {pipeline_mode = #tpu.pipeline_mode<synchronous>, transform_indices = @transform_2, window_bounds = array<i64: 32, 64>}, {pipeline_mode = #tpu.pipeline_mode<synchronous>, transform_indices = @transform_3, window_bounds = array<i64: 36, 16>}, {pipeline_mode = #tpu.pipeline_mode<synchronous>, transform_indices = @transform_4, window_bounds = array<i64: 384, 64>}, {pipeline_mode = #tpu.pipeline_mode<synchronous>, transform_indices = @transform_5, window_bounds = array<i64: 192, 64>}, {pipeline_mode = #tpu.pipeline_mode<synchronous>, transform_indices = @transform_6, window_bounds = array<i64: 64, 64>}, {pipeline_mode = #tpu.pipeline_mode<synchronous>, transform_indices = @transform_7, window_bounds = array<i64: 4, 64>}, {pipeline_mode = #tpu.pipeline_mode<synchronous>, transform_indices = @transform_8, window_bounds = array<i64: 32, 64>}]} {
    %c0 = arith.constant 0 : index
    %c0_0 = arith.constant 0 : index
    %0 = vector.load %arg1[%c0, %c0_0] : memref<16x32xf32, #tpu.memory_space<vmem>>, vector<16x32xf32>
    %c0_1 = arith.constant 0 : index
    %c0_2 = arith.constant 0 : index
    %1 = vector.load %arg3[%c0_1, %c0_2] : memref<32x64xf32, #tpu.memory_space<vmem>>, vector<32x64xf32>
    %cst = arith.constant dense<0.000000e+00> : vector<16x64xf32>
    %2 = tpu.matmul %0, %1, %cst {dimension_numbers = #tpu.dot_dimension_numbers<[1], [0], [0], [1], [0, 0, 1, 1], [], []>} : vector<16x32xf32>, vector<32x64xf32>, vector<16x64xf32> -> vector<16x64xf32>
    %c0_3 = arith.constant 0 : index
    %c0_4 = arith.constant 0 : index
    %3 = vector.load %arg4[%c0_3, %c0_4] : memref<36x16xf32, #tpu.memory_space<vmem>>, vector<36x16xf32>
    %cst_5 = arith.constant dense<0.000000e+00> : vector<36x64xf32>
    %4 = tpu.matmul %3, %2, %cst_5 {dimension_numbers = #tpu.dot_dimension_numbers<[1], [0], [0], [1], [0, 0, 1, 1], [], []>} : vector<36x16xf32>, vector<16x64xf32>, vector<36x64xf32> -> vector<36x64xf32>
    %5 = vector.shape_cast %4 : vector<36x64xf32> to vector<2x18x64xf32>
    %c0_6 = arith.constant 0 : index
    %c0_7 = arith.constant 0 : index
    %c0_8 = arith.constant 0 : index
    %6 = vector.load %arg2[%c0_6, %c0_7, %c0_8] : memref<2x18x64xf32, #tpu.memory_space<vmem>>, vector<2x18x64xf32>
    %c0_9 = arith.constant 0 : index
    %c0_10 = arith.constant 0 : index
    %7 = vector.load %arg7[%c0_9, %c0_10] : memref<64x64xf32, #tpu.memory_space<vmem>>, vector<64x64xf32>
    %c0_11 = arith.constant 0 : index
    %c0_12 = arith.constant 0 : index
    %8 = vector.load %arg8[%c0_11, %c0_12] : memref<4x64xf32, #tpu.memory_space<vmem>>, vector<4x64xf32>
    %9 = vector.extract_strided_slice %6 {offsets = [0, 0, 0], sizes = [2, 16, 64], strides = [1, 1, 1]} : vector<2x18x64xf32> to vector<2x16x64xf32>
    %10 = vector.shape_cast %9 : vector<2x16x64xf32> to vector<32x64xf32>
    %11 = vector.extract_strided_slice %5 {offsets = [0, 0, 0], sizes = [2, 16, 64], strides = [1, 1, 1]} : vector<2x18x64xf32> to vector<2x16x64xf32>
    %12 = vector.shape_cast %11 : vector<2x16x64xf32> to vector<32x64xf32>
    %13 = vector.extract_strided_slice %6 {offsets = [0, 1, 0], sizes = [2, 16, 64], strides = [1, 1, 1]} : vector<2x18x64xf32> to vector<2x16x64xf32>
    %14 = vector.shape_cast %13 : vector<2x16x64xf32> to vector<32x64xf32>
    %15 = vector.extract_strided_slice %5 {offsets = [0, 1, 0], sizes = [2, 16, 64], strides = [1, 1, 1]} : vector<2x18x64xf32> to vector<2x16x64xf32>
    %16 = vector.shape_cast %15 : vector<2x16x64xf32> to vector<32x64xf32>
    %17 = vector.extract_strided_slice %6 {offsets = [0, 2, 0], sizes = [2, 16, 64], strides = [1, 1, 1]} : vector<2x18x64xf32> to vector<2x16x64xf32>
    %18 = vector.shape_cast %17 : vector<2x16x64xf32> to vector<32x64xf32>
    %19 = vector.extract_strided_slice %5 {offsets = [0, 2, 0], sizes = [2, 16, 64], strides = [1, 1, 1]} : vector<2x18x64xf32> to vector<2x16x64xf32>
    %20 = vector.shape_cast %19 : vector<2x16x64xf32> to vector<32x64xf32>
    %21 = tpu.concatenate %10, %12, %14, %16, %18, %20 in 1 : vector<32x64xf32>, vector<32x64xf32>, vector<32x64xf32>, vector<32x64xf32>, vector<32x64xf32>, vector<32x64xf32> -> vector<32x384xf32>
    %22 = arith.truncf %21 : vector<32x384xf32> to vector<32x384xbf16>
    %c0_13 = arith.constant 0 : index
    %c0_14 = arith.constant 0 : index
    %23 = vector.load %arg5[%c0_13, %c0_14] : memref<384x64xbf16, #tpu.memory_space<vmem>>, vector<384x64xbf16>
    %cst_15 = arith.constant dense<0.000000e+00> : vector<32x64xf32>
    %24 = tpu.matmul %22, %23, %cst_15 {dimension_numbers = #tpu.dot_dimension_numbers<[1], [0], [0], [1], [0, 0, 1, 1], [], []>} : vector<32x384xbf16>, vector<384x64xbf16>, vector<32x64xf32> -> vector<32x64xf32>
    %cst_16 = arith.constant dense<0.000000e+00> : vector<32x64xf32>
    %25 = tpu.matmul %24, %7, %cst_16 {dimension_numbers = #tpu.dot_dimension_numbers<[1], [0], [0], [1], [0, 0, 1, 1], [], []>} : vector<32x64xf32>, vector<64x64xf32>, vector<32x64xf32> -> vector<32x64xf32>
    %cst_17 = arith.constant dense<0.000000e+00> : vector<64xf32>
    %26 = vector.multi_reduction <add>, %25, %cst_17 [0] : vector<32x64xf32> to vector<64xf32>
    %27 = vector.shape_cast %26 : vector<64xf32> to vector<1x64xf32>
    %cst_18 = arith.constant 3.125000e-02 : f32
    %28 = vector.broadcast %cst_18 : f32 to vector<1x64xf32>
    %29 = arith.mulf %27, %28 : vector<1x64xf32>
    %30 = arith.mulf %24, %24 : vector<32x64xf32>
    %cst_19 = arith.constant dense<0.000000e+00> : vector<32x64xf32>
    %31 = tpu.matmul %30, %7, %cst_19 {dimension_numbers = #tpu.dot_dimension_numbers<[1], [0], [0], [1], [0, 0, 1, 1], [], []>} : vector<32x64xf32>, vector<64x64xf32>, vector<32x64xf32> -> vector<32x64xf32>
    %cst_20 = arith.constant dense<0.000000e+00> : vector<64xf32>
    %32 = vector.multi_reduction <add>, %31, %cst_20 [0] : vector<32x64xf32> to vector<64xf32>
    %33 = vector.shape_cast %32 : vector<64xf32> to vector<1x64xf32>
    %cst_21 = arith.constant 3.125000e-02 : f32
    %34 = vector.broadcast %cst_21 : f32 to vector<1x64xf32>
    %35 = arith.mulf %33, %34 : vector<1x64xf32>
    %36 = arith.mulf %29, %29 : vector<1x64xf32>
    %37 = arith.subf %35, %36 : vector<1x64xf32>
    %cst_22 = arith.constant 9.99999974E-6 : f32
    %38 = vector.broadcast %cst_22 : f32 to vector<1x64xf32>
    %39 = arith.addf %37, %38 : vector<1x64xf32>
    %40 = math.rsqrt %39 : vector<1x64xf32>
    %41 = vector.extract_strided_slice %8 {offsets = [0, 0], sizes = [1, 64], strides = [1, 1]} : vector<4x64xf32> to vector<1x64xf32>
    %42 = arith.mulf %41, %40 : vector<1x64xf32>
    %43 = vector.extract_strided_slice %8 {offsets = [1, 0], sizes = [1, 64], strides = [1, 1]} : vector<4x64xf32> to vector<1x64xf32>
    %44 = arith.mulf %29, %42 : vector<1x64xf32>
    %45 = arith.subf %43, %44 : vector<1x64xf32>
    %46 = vector.broadcast %42 : vector<1x64xf32> to vector<32x64xf32>
    %47 = arith.mulf %24, %46 : vector<32x64xf32>
    %48 = vector.broadcast %45 : vector<1x64xf32> to vector<32x64xf32>
    %49 = arith.addf %47, %48 : vector<32x64xf32>
    %cst_23 = arith.constant 0.000000e+00 : f32
    %50 = vector.broadcast %cst_23 : f32 to vector<32x64xf32>
    %51 = arith.maximumf %49, %50 : vector<32x64xf32>
    %cst_24 = arith.constant 0.000000e+00 : f32
    %52 = vector.broadcast %cst_24 : f32 to vector<2x1x64xf32>
    %c0_25 = arith.constant 0 : index
    %c0_26 = arith.constant 0 : index
    %c0_27 = arith.constant 0 : index
    %53 = vector.load %arg10[%c0_25, %c0_26, %c0_27] : memref<2x18x64xf32, #tpu.memory_space<vmem>>, vector<2x1x64xf32>
    tpu.vector_store %arg10[%c0_25, %c0_26, %c0_27], %52 {strides = array<i32>} : memref<2x18x64xf32, #tpu.memory_space<vmem>>, vector<2x1x64xf32>,
    %c0_28 = arith.constant 0 : index
    %c17 = arith.constant 17 : index
    %c0_29 = arith.constant 0 : index
    %54 = vector.load %arg10[%c0_28, %c17, %c0_29] : memref<2x18x64xf32, #tpu.memory_space<vmem>>, vector<2x1x64xf32>
    tpu.vector_store %arg10[%c0_28, %c17, %c0_29], %52 {strides = array<i32>} : memref<2x18x64xf32, #tpu.memory_space<vmem>>, vector<2x1x64xf32>,
    %55 = vector.shape_cast %51 : vector<32x64xf32> to vector<2x16x64xf32>
    %c0_30 = arith.constant 0 : index
    %c1 = arith.constant 1 : index
    %c0_31 = arith.constant 0 : index
    %56 = vector.load %arg10[%c0_30, %c1, %c0_31] : memref<2x18x64xf32, #tpu.memory_space<vmem>>, vector<2x16x64xf32>
    tpu.vector_store %arg10[%c0_30, %c1, %c0_31], %55 {strides = array<i32>} : memref<2x18x64xf32, #tpu.memory_space<vmem>>, vector<2x16x64xf32>,
    %c0_32 = arith.constant 0 : index
    %c0_33 = arith.constant 0 : index
    %c0_34 = arith.constant 0 : index
    %57 = vector.load %arg10[%c0_32, %c0_33, %c0_34] : memref<2x18x64xf32, #tpu.memory_space<vmem>>, vector<2x18x64xf32>
    %58 = vector.extract_strided_slice %57 {offsets = [0, 0, 0], sizes = [2, 16, 64], strides = [1, 1, 1]} : vector<2x18x64xf32> to vector<2x16x64xf32>
    %59 = vector.shape_cast %58 : vector<2x16x64xf32> to vector<32x64xf32>
    %60 = vector.extract_strided_slice %57 {offsets = [0, 1, 0], sizes = [2, 16, 64], strides = [1, 1, 1]} : vector<2x18x64xf32> to vector<2x16x64xf32>
    %61 = vector.shape_cast %60 : vector<2x16x64xf32> to vector<32x64xf32>
    %62 = vector.extract_strided_slice %57 {offsets = [0, 2, 0], sizes = [2, 16, 64], strides = [1, 1, 1]} : vector<2x18x64xf32> to vector<2x16x64xf32>
    %63 = vector.shape_cast %62 : vector<2x16x64xf32> to vector<32x64xf32>
    %64 = tpu.concatenate %59, %61, %63 in 1 : vector<32x64xf32>, vector<32x64xf32>, vector<32x64xf32> -> vector<32x192xf32>
    %65 = arith.truncf %64 : vector<32x192xf32> to vector<32x192xbf16>
    %c0_35 = arith.constant 0 : index
    %c0_36 = arith.constant 0 : index
    %66 = vector.load %arg6[%c0_35, %c0_36] : memref<192x64xbf16, #tpu.memory_space<vmem>>, vector<192x64xbf16>
    %cst_37 = arith.constant dense<0.000000e+00> : vector<32x64xf32>
    %67 = tpu.matmul %65, %66, %cst_37 {dimension_numbers = #tpu.dot_dimension_numbers<[1], [0], [0], [1], [0, 0, 1, 1], [], []>} : vector<32x192xbf16>, vector<192x64xbf16>, vector<32x64xf32> -> vector<32x64xf32>
    %cst_38 = arith.constant dense<0.000000e+00> : vector<32x64xf32>
    %68 = tpu.matmul %67, %7, %cst_38 {dimension_numbers = #tpu.dot_dimension_numbers<[1], [0], [0], [1], [0, 0, 1, 1], [], []>} : vector<32x64xf32>, vector<64x64xf32>, vector<32x64xf32> -> vector<32x64xf32>
    %cst_39 = arith.constant dense<0.000000e+00> : vector<64xf32>
    %69 = vector.multi_reduction <add>, %68, %cst_39 [0] : vector<32x64xf32> to vector<64xf32>
    %70 = vector.shape_cast %69 : vector<64xf32> to vector<1x64xf32>
    %cst_40 = arith.constant 3.125000e-02 : f32
    %71 = vector.broadcast %cst_40 : f32 to vector<1x64xf32>
    %72 = arith.mulf %70, %71 : vector<1x64xf32>
    %73 = arith.mulf %67, %67 : vector<32x64xf32>
    %cst_41 = arith.constant dense<0.000000e+00> : vector<32x64xf32>
    %74 = tpu.matmul %73, %7, %cst_41 {dimension_numbers = #tpu.dot_dimension_numbers<[1], [0], [0], [1], [0, 0, 1, 1], [], []>} : vector<32x64xf32>, vector<64x64xf32>, vector<32x64xf32> -> vector<32x64xf32>
    %cst_42 = arith.constant dense<0.000000e+00> : vector<64xf32>
    %75 = vector.multi_reduction <add>, %74, %cst_42 [0] : vector<32x64xf32> to vector<64xf32>
    %76 = vector.shape_cast %75 : vector<64xf32> to vector<1x64xf32>
    %cst_43 = arith.constant 3.125000e-02 : f32
    %77 = vector.broadcast %cst_43 : f32 to vector<1x64xf32>
    %78 = arith.mulf %76, %77 : vector<1x64xf32>
    %79 = arith.mulf %72, %72 : vector<1x64xf32>
    %80 = arith.subf %78, %79 : vector<1x64xf32>
    %cst_44 = arith.constant 9.99999974E-6 : f32
    %81 = vector.broadcast %cst_44 : f32 to vector<1x64xf32>
    %82 = arith.addf %80, %81 : vector<1x64xf32>
    %83 = math.rsqrt %82 : vector<1x64xf32>
    %84 = vector.extract_strided_slice %8 {offsets = [2, 0], sizes = [1, 64], strides = [1, 1]} : vector<4x64xf32> to vector<1x64xf32>
    %85 = arith.mulf %84, %83 : vector<1x64xf32>
    %86 = vector.extract_strided_slice %8 {offsets = [3, 0], sizes = [1, 64], strides = [1, 1]} : vector<4x64xf32> to vector<1x64xf32>
    %87 = arith.mulf %72, %85 : vector<1x64xf32>
    %88 = arith.subf %86, %87 : vector<1x64xf32>
    %89 = vector.broadcast %85 : vector<1x64xf32> to vector<32x64xf32>
    %90 = arith.mulf %67, %89 : vector<32x64xf32>
    %91 = vector.broadcast %88 : vector<1x64xf32> to vector<32x64xf32>
    %92 = arith.addf %90, %91 : vector<32x64xf32>
    %cst_45 = arith.constant 0.000000e+00 : f32
    %93 = vector.broadcast %cst_45 : f32 to vector<32x64xf32>
    %94 = arith.maximumf %92, %93 : vector<32x64xf32>
    %c0_46 = arith.constant 0 : index
    %c0_47 = arith.constant 0 : index
    %95 = vector.load %arg9[%c0_46, %c0_47] : memref<32x64xf32, #tpu.memory_space<vmem>>, vector<32x64xf32>
    tpu.vector_store %arg9[%c0_46, %c0_47], %94 {strides = array<i32>} : memref<32x64xf32, #tpu.memory_space<vmem>>, vector<32x64xf32>,
    return
  }
  func.func @transform_0(%arg0: i32) -> (i32, i32) {
    %c0_i32 = arith.constant 0 : i32
    %c0_i32_0 = arith.constant 0 : i32
    %c0_i32_1 = arith.constant 0 : i32
    return %c0_i32, %c0_i32_0 : i32, i32
  }
  func.func @transform_1(%arg0: i32) -> (i32, i32, i32) {
    %c0_i32 = arith.constant 0 : i32
    %c0_i32_0 = arith.constant 0 : i32
    %c0_i32_1 = arith.constant 0 : i32
    %c0_i32_2 = arith.constant 0 : i32
    return %c0_i32, %c0_i32_0, %c0_i32_1 : i32, i32, i32
  }
  func.func @transform_2(%arg0: i32) -> (i32, i32) {
    %c0_i32 = arith.constant 0 : i32
    %c0_i32_0 = arith.constant 0 : i32
    %c0_i32_1 = arith.constant 0 : i32
    return %c0_i32, %c0_i32_0 : i32, i32
  }
  func.func @transform_3(%arg0: i32) -> (i32, i32) {
    %c0_i32 = arith.constant 0 : i32
    %c0_i32_0 = arith.constant 0 : i32
    %c0_i32_1 = arith.constant 0 : i32
    return %c0_i32, %c0_i32_0 : i32, i32
  }
  func.func @transform_4(%arg0: i32) -> (i32, i32) {
    %c0_i32 = arith.constant 0 : i32
    %c0_i32_0 = arith.constant 0 : i32
    %c0_i32_1 = arith.constant 0 : i32
    return %c0_i32, %c0_i32_0 : i32, i32
  }
  func.func @transform_5(%arg0: i32) -> (i32, i32) {
    %c0_i32 = arith.constant 0 : i32
    %c0_i32_0 = arith.constant 0 : i32
    %c0_i32_1 = arith.constant 0 : i32
    return %c0_i32, %c0_i32_0 : i32, i32
  }
  func.func @transform_6(%arg0: i32) -> (i32, i32) {
    %c0_i32 = arith.constant 0 : i32
    %c0_i32_0 = arith.constant 0 : i32
    %c0_i32_1 = arith.constant 0 : i32
    return %c0_i32, %c0_i32_0 : i32, i32
  }
  func.func @transform_7(%arg0: i32) -> (i32, i32) {
    %c0_i32 = arith.constant 0 : i32
    %c0_i32_0 = arith.constant 0 : i32
    %c0_i32_1 = arith.constant 0 : i32
    return %c0_i32, %c0_i32_0 : i32, i32
  }
  func.func @transform_8(%arg0: i32) -> (i32, i32) {
    %c0_i32 = arith.constant 0 : i32
    %c0_i32_0 = arith.constant 0 : i32
    %c0_i32_1 = arith.constant 0 : i32
    return %c0_i32, %c0_i32_0 : i32, i32
  }
}

</mosaic_0001>

<llo_original>
// kernel: tile.23
$region0: #{tile.23}
  #allocation0 [shape = 's32[1]{0}', space=sflag, size = 0x4, scoped, tag = 'scoped memory for tile.23']
  %s0 = inlined_call_operand.vmem [shape: f32[4], index: 0, kind: input, shape index: {}]
  %s1 = inlined_call_operand.vmem [shape: f32[16,4], index: 1, kind: output, shape index: {}]
  // Predicated region
  $region2: #{tile.23} parent=0 // pred_check
    _
  $region3: #{tile.23} parent=0 // pred_check_branch
    %3 = sbr.rel (0) target = $region5
  $region4: #{tile.23} parent=0 // pred_region
    _
  $region5: #{tile.23} parent=0 // pred_fallthru
    _
  %v4 = vld [vmem:[%s0] ss:$0 sm:$0xff]
  %5 = vst [vmem:[%s1] sm:$0xff] %v4
  %s6 = scalar_lea.vmem %s1, 8
  %7 = vst [vmem:[%s6] sm:$0xff] %v4

// kernel: tile.36
$region0: #{tile.36}
  %s0 = inlined_call_operand.vmem [shape: f32[16,4], index: 0, kind: input, shape index: {}]
  %s1 = inlined_call_operand.vmem [shape: f32[1,64], index: 1, kind: output, shape index: {}]
  $region1: #{tile.36} parent=0
    #allocation0 [shape = 'u8[4096]{0}', space=vmem, size = 0x1000, scoped, tag = 'scoped mem for output reshape']
    %v2 = vld [vmem:[%s0] sm:$0x1]
    %vm3 = vcmask 31744
    %4 = vst.msk [vmem:[#allocation0] sm:$0x1] %vm3, %v2
    %s5 = scalar_lea.vmem %s0, 15
    %v6 = vld [vmem:[%s5] sm:$0x1]
    %7 = vrot.lane.b32.xlu0 %v6, 60
    %v8 = vpop.permute.xlu0 %7
    %vm9 = vcmask 523744
    %10 = vst.msk [vmem:[#allocation0] sm:$0x1] %vm9, %v8
    %s11 = scalar_lea.vmem %s0, 14
    %v12 = vld [vmem:[%s11] sm:$0x1]
    %13 = vrot.lane.b32.xlu0 %v12, 56
    %v14 = vpop.permute.xlu0 %13
    %vm15 = vcmask 490944
    %16 = vst.msk [vmem:[#allocation0] sm:$0x1] %vm15, %v14
    %s17 = scalar_lea.vmem %s0, 13
    %v18 = vld [vmem:[%s17] sm:$0x1]
    %19 = vrot.lane.b32.xlu0 %v18, 52
    %v20 = vpop.permute.xlu0 %19
    %vm21 = vcmask 458144
    %22 = vst.msk [vmem:[#allocation0] sm:$0x1] %vm21, %v20
    %s23 = scalar_lea.vmem %s0, 12
    %v24 = vld [vmem:[%s23] sm:$0x1]
    %25 = vrot.lane.b32.xlu0 %v24, 48
    %v26 = vpop.permute.xlu0 %25
    %vm27 = vcmask 425344
    %28 = vst.msk [vmem:[#allocation0] sm:$0x1] %vm27, %v26
    %s29 = scalar_lea.vmem %s0, 11
    %v30 = vld [vmem:[%s29] sm:$0x1]
    %31 = vrot.lane.b32.xlu0 %v30, 44
    %v32 = vpop.permute.xlu0 %31
    %vm33 = vcmask 392544
    %34 = vst.msk [vmem:[#allocation0] sm:$0x1] %vm33, %v32
    %s35 = scalar_lea.vmem %s0, 10
    %v36 = vld [vmem:[%s35] sm:$0x1]
    %37 = vrot.lane.b32.xlu0 %v36, 40
    %v38 = vpop.permute.xlu0 %37
    %vm39 = vcmask 359744
    %40 = vst.msk [vmem:[#allocation0] sm:$0x1] %vm39, %v38
    %s41 = scalar_lea.vmem %s0, 9
    %v42 = vld [vmem:[%s41] sm:$0x1]
    %43 = vrot.lane.b32.xlu0 %v42, 36
    %v44 = vpop.permute.xlu0 %43
    %vm45 = vcmask 326944
    %46 = vst.msk [vmem:[#allocation0] sm:$0x1] %vm45, %v44
    %s47 = scalar_lea.vmem %s0, 8
    %v48 = vld [vmem:[%s47] sm:$0x1]
    %49 = vrot.lane.b32.xlu0 %v48, 32
    %v50 = vpop.permute.xlu0 %49
    %vm51 = vcmask 294144
    %52 = vst.msk [vmem:[#allocation0] sm:$0x1] %vm51, %v50
    %s53 = scalar_lea.vmem %s0, 7
    %v54 = vld [vmem:[%s53] sm:$0x1]
    %55 = vrot.lane.b32.xlu0 %v54, 28
    %v56 = vpop.permute.xlu0 %55
    %vm57 = vcmask 261344
    %58 = vst.msk [vmem:[#allocation0] sm:$0x1] %vm57, %v56
    %s59 = scalar_lea.vmem %s0, 6
    %v60 = vld [vmem:[%s59] sm:$0x1]
    %61 = vrot.lane.b32.xlu0 %v60, 24
    %v62 = vpop.permute.xlu0 %61
    %vm63 = vcmask 228544
    %64 = vst.msk [vmem:[#allocation0] sm:$0x1] %vm63, %v62
    %s65 = scalar_lea.vmem %s0, 5
    %v66 = vld [vmem:[%s65] sm:$0x1]
    %67 = vrot.lane.b32.xlu0 %v66, 20
    %v68 = vpop.permute.xlu0 %67
    %vm69 = vcmask 195744
    %70 = vst.msk [vmem:[#allocation0] sm:$0x1] %vm69, %v68
    %s71 = scalar_lea.vmem %s0, 4
    %v72 = vld [vmem:[%s71] sm:$0x1]
    %73 = vrot.lane.b32.xlu0 %v72, 16
    %v74 = vpop.permute.xlu0 %73
    %vm75 = vcmask 162944
    %76 = vst.msk [vmem:[#allocation0] sm:$0x1] %vm75, %v74
    %s77 = scalar_lea.vmem %s0, 3
    %v78 = vld [vmem:[%s77] sm:$0x1]
    %79 = vrot.lane.b32.xlu0 %v78, 12
    %v80 = vpop.permute.xlu0 %79
    %vm81 = vcmask 130144
    %82 = vst.msk [vmem:[#allocation0] sm:$0x1] %vm81, %v80
    %s83 = scalar_lea.vmem %s0, 2
    %v84 = vld [vmem:[%s83] sm:$0x1]
    %85 = vrot.lane.b32.xlu0 %v84, 8
    %v86 = vpop.permute.xlu0 %85
    %vm87 = vcmask 97344
    %88 = vst.msk [vmem:[#allocation0] sm:$0x1] %vm87, %v86
    %s89 = scalar_lea.vmem %s0, 1
    %v90 = vld [vmem:[%s89] sm:$0x1]
    %91 = vrot.lane.b32.xlu0 %v90, 4
    %v92 = vpop.permute.xlu0 %91
    %vm93 = vcmask 64544
    %94 = vst.msk [vmem:[#allocation0] sm:$0x1] %vm93, %v92
    %s96 = sshllo.u32 0, 1
    %v98 = vld [vmem:[#allocation0] sm:%s96]
    %s99 = sshllo.u32 0, 1
    %100 = vst [vmem:[%s1] sm:%s99] %v98

// kernel: up_forward.1
$region0: #{up_forward.1}
  #allocation0 [shape = 'u32[]', space=smem, size = 0x4, offset = 0x4, fixed_abs, tag = 'smem constant byte address 0x4 - core index']
  #allocation1 [shape = 'u32[144,128]{1,0:T(1,128)}', space=vmem, size = 0x12000, scoped, tag = 'internal scratch']
  #allocation2 [shape = 'f32[2,18,64]{2,1,0:T(8,128)}', space=vmem, size = 0x6000, scoped, tag = 'scratch operand']
  %s0 = inlined_call_operand.vmem [shape: f32[16,32], index: 0, kind: input, shape index: {}]
  %s1 = inlined_call_operand.vmem [shape: f32[2,18,64], index: 1, kind: input, shape index: {}]
  %s2 = inlined_call_operand.vmem [shape: f32[32,64], index: 2, kind: input, shape index: {}]
  %s3 = inlined_call_operand.vmem [shape: f32[36,16], index: 3, kind: input, shape index: {}]
  %s4 = inlined_call_operand.vmem [shape: bf16[384,64], index: 4, kind: input, shape index: {}]
  %s5 = inlined_call_operand.vmem [shape: bf16[192,64], index: 5, kind: input, shape index: {}]
  %s6 = inlined_call_operand.vmem [shape: f32[64,64], index: 6, kind: input, shape index: {}]
  %s7 = inlined_call_operand.vmem [shape: f32[4,64], index: 7, kind: input, shape index: {}]
  %s8 = inlined_call_operand.vmem [shape: f32[32,64], index: 8, kind: output, shape index: {}]
  %s9 = sld [smem:[#allocation0]]
  $region42: #{up_forward.1} parent=0
    _
  %s11 = ssub.s32 1, %s9
  %s12 = scalar_select 0, %s11, %s9
  // Predicated region
  $region2: #{up_forward.1} parent=0 // pred_check
    _
  $region3: #{up_forward.1} parent=0 // pred_check_branch
    %14 = sbr.rel (0) target = $region5
  $region4: #{up_forward.1} parent=0 // pred_region
    _
  $region5: #{up_forward.1} parent=0 // pred_fallthru
    _
  // Predicated region
  $region6: #{up_forward.1} parent=0 // pred_check
    _
  $region7: #{up_forward.1} parent=0 // pred_check_branch
    %16 = sbr.rel (0) target = $region9
  $region8: #{up_forward.1} parent=0 // pred_region
    _
  $region9: #{up_forward.1} parent=0 // pred_fallthru
    _
  // Predicated region
  $region10: #{up_forward.1} parent=0 // pred_check
    _
  $region11: #{up_forward.1} parent=0 // pred_check_branch
    %18 = sbr.rel (0) target = $region13
  $region12: #{up_forward.1} parent=0 // pred_region
    _
  $region13: #{up_forward.1} parent=0 // pred_fallthru
    _
  // Predicated region
  $region14: #{up_forward.1} parent=0 // pred_check
    _
  $region15: #{up_forward.1} parent=0 // pred_check_branch
    %20 = sbr.rel (0) target = $region17
  $region16: #{up_forward.1} parent=0 // pred_region
    _
  $region17: #{up_forward.1} parent=0 // pred_fallthru
    _
  // Predicated region
  $region18: #{up_forward.1} parent=0 // pred_check
    _
  $region19: #{up_forward.1} parent=0 // pred_check_branch
    %22 = sbr.rel (0) target = $region21
  $region20: #{up_forward.1} parent=0 // pred_region
    _
  $region21: #{up_forward.1} parent=0 // pred_fallthru
    _
  // Predicated region
  $region22: #{up_forward.1} parent=0 // pred_check
    _
  $region23: #{up_forward.1} parent=0 // pred_check_branch
    %24 = sbr.rel (0) target = $region25
  $region24: #{up_forward.1} parent=0 // pred_region
    _
  $region25: #{up_forward.1} parent=0 // pred_fallthru
    _
  // Predicated region
  $region26: #{up_forward.1} parent=0 // pred_check
    _
  $region27: #{up_forward.1} parent=0 // pred_check_branch
    %26 = sbr.rel (0) target = $region29
  $region28: #{up_forward.1} parent=0 // pred_region
    _
  $region29: #{up_forward.1} parent=0 // pred_fallthru
    _
  // Predicated region
  $region30: #{up_forward.1} parent=0 // pred_check
    _
  $region31: #{up_forward.1} parent=0 // pred_check_branch
    %28 = sbr.rel (0) target = $region33
  $region32: #{up_forward.1} parent=0 // pred_region
    _
  $region33: #{up_forward.1} parent=0 // pred_fallthru
    _
  %v30 = vld [vmem:[%s0] sm:$0xff]
  %v31 = vld [vmem:[%s0 + $0x8] sm:$0xff]
  %v32 = vld [vmem:[%s2] sm:$0xff]
  %v33 = vld [vmem:[%s2 + $0x8] sm:$0xff]
  %v34 = vld [vmem:[%s2 + $0x10] sm:$0xff]
  %v35 = vld [vmem:[%s2 + $0x18] sm:$0xff]
  %vm36 = vcmask 261120
  %v38 = vsel %vm36, %v30, 0
  %v41 = vsel %vm36, %v31, 0
  %43 = vmatprep.subr.mxu0 0.0
  %44 = vmatpush1.msra.mxu0 %v32
  %45 = vmatprep.subr.mxu0 0.0
  %46 = vmatpush1.msra.mxu0 %v33
  %47 = vmatprep.subr.mxu0 0.0
  %48 = vmatpush1.msra.mxu0 %v34
  %49 = vmatprep.subr.mxu0 0.0
  %50 = vmatpush1.msra.mxu0 %v35
  %51 = vmatprep.subr.mxu0 0.0
  %52 = vmatpush1.msra.mxu0 0.0
  %53 = vmatprep.subr.mxu0 0.0
  %54 = vmatpush1.msra.mxu0 0.0
  %55 = vmatprep.subr.mxu0 0.0
  %56 = vmatpush1.msra.mxu0 0.0
  %57 = vmatprep.subr.mxu0 0.0
  %58 = vmatpush1.msra.mxu0 0.0
  %59 = vmatprep.subr.mxu0 0.0
  %60 = vmatpush1.msra.mxu0 0.0
  %61 = vmatprep.subr.mxu0 0.0
  %62 = vmatpush1.msra.mxu0 0.0
  %63 = vmatprep.subr.mxu0 0.0
  %64 = vmatpush1.msra.mxu0 0.0
  %65 = vmatprep.subr.mxu0 0.0
  %66 = vmatpush1.msra.mxu0 0.0
  %67 = vmatprep.subr.mxu0 0.0
  %68 = vmatpush1.msra.mxu0 0.0
  %69 = vmatprep.subr.mxu0 0.0
  %70 = vmatpush1.msra.mxu0 0.0
  %71 = vmatprep.subr.mxu0 0.0
  %72 = vmatpush1.msra.mxu0 0.0
  %73 = vmatprep.subr.mxu0 0.0
  %74 = vmatpush1.msra.mxu0 0.0
  %75 = vmatprep.subr.mxu0 0.0
  %76 = vmatpush1.msra.mxu0 0.0
  %77 = vmatprep.subr.mxu0 0.0
  %78 = vmatpush1.msra.mxu0 0.0
  %79 = vmatprep.subr.mxu0 0.0
  %80 = vmatpush1.msra.mxu0 0.0
  %81 = vmatprep.subr.mxu0 0.0
  %82 = vmatpush1.msra.mxu0 0.0
  %83 = vmatprep.subr.mxu0 0.0
  %84 = vmatpush1.msra.mxu0 0.0
  %85 = vmatprep.subr.mxu0 0.0
  %86 = vmatpush1.msra.mxu0 0.0
  %87 = vmatprep.subr.mxu0 0.0
  %88 = vmatpush1.msra.mxu0 0.0
  %89 = vmatprep.subr.mxu0 0.0
  %90 = vmatpush1.msra.mxu0 0.0
  %91 = vmatprep.subr.mxu0 0.0
  %92 = vmatpush1.msra.mxu0 0.0
  %93 = vmatprep.subr.mxu0 0.0
  %94 = vmatpush1.msra.mxu0 0.0
  %95 = vmatprep.subr.mxu0 0.0
  %96 = vmatpush1.msra.mxu0 0.0
  %97 = vmatprep.subr.mxu0 0.0
  %98 = vmatpush1.msra.mxu0 0.0
  %99 = vmatprep.subr.mxu0 0.0
  %100 = vmatpush1.msra.mxu0 0.0
  %101 = vmatprep.subr.mxu0 0.0
  %102 = vmatpush1.msra.mxu0 0.0
  %103 = vmatprep.subr.mxu0 0.0
  %104 = vmatpush1.msra.mxu0 0.0
  %105 = vmatprep.subr.mxu0 0.0
  %106 = vmatpush1.msra.mxu0 0.0
  %107 = vmatprep.mubr.f32.mxu0 0.0
  %108 = vmatmul.mubr.f32.gmra.mrb[0].mxu0 %v38
  %v109 = vpop.f32.mrb[0].mxu0
  %v110 = vadd.f32 0.0, %v109
  %v111 = vpop.f32.mrb[0].mxu0
  %112 = vmatprep.mubr.f32.mxu0 0.0
  %113 = vmatmul.mubr.f32.gmra.mrb[0].mxu0 %v41
  %v114 = vpop.f32.mrb[0].mxu0
  %v115 = vadd.f32 0.0, %v114
  %v116 = vpop.f32.mrb[0].mxu0
  %117 = vdwg.mxu0
  %v118 = vld [vmem:[%s3] sm:$0xff]
  %v119 = vld [vmem:[%s3 + $0x8] sm:$0xff]
  %v120 = vld [vmem:[%s3 + $0x10] sm:$0xff]
  %v121 = vld [vmem:[%s3 + $0x18] sm:$0xff]
  %v122 = vld [vmem:[%s3 + $0x20] sm:$0xf]
  %vm123 = vcmask 130048
  %v125 = vsel %vm123, %v118, 0
  %v128 = vsel %vm123, %v119, 0
  %v131 = vsel %vm123, %v120, 0
  %v134 = vsel %vm123, %v121, 0
  %v137 = vsel %vm123, %v122, 0
  %139 = vmatprep.subr.mxu0 0.0
  %140 = vmatpush1.msra.mxu0 %v110
  %141 = vmatprep.subr.mxu0 0.0
  %142 = vmatpush1.msra.mxu0 %v115
  %143 = vmatprep.subr.mxu0 0.0
  %144 = vmatpush1.msra.mxu0 0.0
  %145 = vmatprep.subr.mxu0 0.0
  %146 = vmatpush1.msra.mxu0 0.0
  %147 = vmatprep.subr.mxu0 0.0
  %148 = vmatpush1.msra.mxu0 0.0
  %149 = vmatprep.subr.mxu0 0.0
  %150 = vmatpush1.msra.mxu0 0.0
  %151 = vmatprep.subr.mxu0 0.0
  %152 = vmatpush1.msra.mxu0 0.0
  %153 = vmatprep.subr.mxu0 0.0
  %154 = vmatpush1.msra.mxu0 0.0
  %155 = vmatprep.subr.mxu0 0.0
  %156 = vmatpush1.msra.mxu0 0.0
  %157 = vmatprep.subr.mxu0 0.0
  %158 = vmatpush1.msra.mxu0 0.0
  %159 = vmatprep.subr.mxu0 0.0
  %160 = vmatpush1.msra.mxu0 0.0
  %161 = vmatprep.subr.mxu0 0.0
  %162 = vmatpush1.msra.mxu0 0.0
  %163 = vmatprep.subr.mxu0 0.0
  %164 = vmatpush1.msra.mxu0 0.0
  %165 = vmatprep.subr.mxu0 0.0
  %166 = vmatpush1.msra.mxu0 0.0
  %167 = vmatprep.subr.mxu0 0.0
  %168 = vmatpush1.msra.mxu0 0.0
  %169 = vmatprep.subr.mxu0 0.0
  %170 = vmatpush1.msra.mxu0 0.0
  %171 = vmatprep.subr.mxu0 0.0
  %172 = vmatpush1.msra.mxu0 0.0
  %173 = vmatprep.subr.mxu0 0.0
  %174 = vmatpush1.msra.mxu0 0.0
  %175 = vmatprep.subr.mxu0 0.0
  %176 = vmatpush1.msra.mxu0 0.0
  %177 = vmatprep.subr.mxu0 0.0
  %178 = vmatpush1.msra.mxu0 0.0
  %179 = vmatprep.subr.mxu0 0.0
  %180 = vmatpush1.msra.mxu0 0.0
  %181 = vmatprep.subr.mxu0 0.0
  %182 = vmatpush1.msra.mxu0 0.0
  %183 = vmatprep.subr.mxu0 0.0
  %184 = vmatpush1.msra.mxu0 0.0
  %185 = vmatprep.subr.mxu0 0.0
  %186 = vmatpush1.msra.mxu0 0.0
  %187 = vmatprep.subr.mxu0 0.0
  %188 = vmatpush1.msra.mxu0 0.0
  %189 = vmatprep.subr.mxu0 0.0
  %190 = vmatpush1.msra.mxu0 0.0
  %191 = vmatprep.subr.mxu0 0.0
  %192 = vmatpush1.msra.mxu0 0.0
  %193 = vmatprep.subr.mxu0 0.0
  %194 = vmatpush1.msra.mxu0 0.0
  %195 = vmatprep.subr.mxu0 0.0
  %196 = vmatpush1.msra.mxu0 0.0
  %197 = vmatprep.subr.mxu0 0.0
  %198 = vmatpush1.msra.mxu0 0.0
  %199 = vmatprep.subr.mxu0 0.0
  %200 = vmatpush1.msra.mxu0 0.0
  %201 = vmatprep.subr.mxu0 0.0
  %202 = vmatpush1.msra.mxu0 0.0
  %203 = vmatprep.mubr.f32.mxu0 0.0
  %204 = vmatmul.mubr.f32.gmra.mrb[0].mxu0 %v125
  %v205 = vpop.f32.mrb[0].mxu0
  %v206 = vadd.f32 0.0, %v205
  %v207 = vpop.f32.mrb[0].mxu0
  %208 = vmatprep.mubr.f32.mxu0 0.0
  %209 = vmatmul.mubr.f32.gmra.mrb[0].mxu0 %v128
  %v210 = vpop.f32.mrb[0].mxu0
  %v211 = vadd.f32 0.0, %v210
  %v212 = vpop.f32.mrb[0].mxu0
  %213 = vmatprep.mubr.f32.mxu0 0.0
  %214 = vmatmul.mubr.f32.gmra.mrb[0].mxu0 %v131
  %v215 = vpop.f32.mrb[0].mxu0
  %v216 = vadd.f32 0.0, %v215
  %v217 = vpop.f32.mrb[0].mxu0
  %218 = vmatprep.mubr.f32.mxu0 0.0
  %219 = vmatmul.mubr.f32.gmra.mrb[0].mxu0 %v134
  %v220 = vpop.f32.mrb[0].mxu0
  %v221 = vadd.f32 0.0, %v220
  %v222 = vpop.f32.mrb[0].mxu0
  %223 = vmatprep.mubr.f32.mxu0 0.0
  %224 = vmatmul.mubr.f32.gmra.mrb[0].mxu0 %v137
  %v225 = vpop.f32.mrb[0].mxu0
  %v226 = vadd.f32 0.0, %v225
  %v227 = vpop.f32.mrb[0].mxu0
  %228 = vdwg.mxu0
  %v234 = vcombine.high %v206, %v206
  %v236 = vunpack.c.l.s4 1983009808
  %v237 = vunpack.c.0.s8 %v236
  %v238 = vlaneseq
  %v239 = vshrl.u32 %v238, 7
  %v240 = vsub.s32 %v237, %v239
  %v241 = vrot.slane %v206, %v240
  %v243 = vunpack.c.l.s4 1983009808
  %v244 = vunpack.c.0.s8 %v243
  %v245 = vlaneseq
  %v246 = vshrl.u32 %v245, 7
  %v247 = vsub.s32 %v244, %v246
  %v248 = vrot.slane %v234, %v247
  %v249 = vcombine.high %v241, %v241
  %v250 = vcombine.high %v248, %v248
  %v251 = vcombine.high %v211, %v211
  %v253 = vunpack.c.l.s4 1983009808
  %v254 = vunpack.c.0.s8 %v253
  %v255 = vlaneseq
  %v256 = vshrl.u32 %v255, 7
  %v257 = vsub.s32 %v254, %v256
  %v258 = vrot.slane %v211, %v257
  %v260 = vunpack.c.l.s4 1983009808
  %v261 = vunpack.c.0.s8 %v260
  %v262 = vlaneseq
  %v263 = vshrl.u32 %v262, 7
  %v264 = vsub.s32 %v261, %v263
  %v265 = vrot.slane %v251, %v264
  %v266 = vcombine.high %v258, %v258
  %v267 = vcombine.high %v265, %v265
  %v268 = vcombine.high %v216, %v216
  %v270 = vunpack.c.l.s4 1983009808
  %v271 = vunpack.c.0.s8 %v270
  %v272 = vlaneseq
  %v273 = vshrl.u32 %v272, 7
  %v274 = vsub.s32 %v271, %v273
  %v275 = vrot.slane %v216, %v274
  %v277 = vunpack.c.l.s4 1983009808
  %v278 = vunpack.c.0.s8 %v277
  %v279 = vlaneseq
  %v280 = vshrl.u32 %v279, 7
  %v281 = vsub.s32 %v278, %v280
  %v282 = vrot.slane %v268, %v281
  %v283 = vcombine.high %v275, %v275
  %v284 = vcombine.high %v282, %v282
  %v285 = vcombine.high %v221, %v221
  %v287 = vunpack.c.l.s4 1983009808
  %v288 = vunpack.c.0.s8 %v287
  %v289 = vlaneseq
  %v290 = vshrl.u32 %v289, 7
  %v291 = vsub.s32 %v288, %v290
  %v292 = vrot.slane %v221, %v291
  %v294 = vunpack.c.l.s4 1983009808
  %v295 = vunpack.c.0.s8 %v294
  %v296 = vlaneseq
  %v297 = vshrl.u32 %v296, 7
  %v298 = vsub.s32 %v295, %v297
  %v299 = vrot.slane %v285, %v298
  %v300 = vcombine.high %v292, %v292
  %v301 = vcombine.high %v299, %v299
  %v303 = vunpack.c.l.s4 1983009808
  %v304 = vunpack.c.0.s8 %v303
  %v305 = vlaneseq
  %v306 = vshrl.u32 %v305, 7
  %v307 = vsub.s32 %v304, %v306
  %v308 = vrot.slane %v226, %v307
  %v309 = vcombine.high %v308, %v308
  %v310 = vld [vmem:[%s1] sm:$0xff]
  %v311 = vld [vmem:[%s1 + $0x8] sm:$0xff]
  %v312 = vld [vmem:[%s1 + $0x10] sm:$0x3]
  %v313 = vld [vmem:[%s1 + $0x18] sm:$0xff]
  %v314 = vld [vmem:[%s1 + $0x20] sm:$0xff]
  %v315 = vld [vmem:[%s1 + $0x28] sm:$0x3]
  %v316 = vld [vmem:[%s6] sm:$0xff]
  %v317 = vld [vmem:[%s6 + $0x8] sm:$0xff]
  %v318 = vld [vmem:[%s6 + $0x10] sm:$0xff]
  %v319 = vld [vmem:[%s6 + $0x18] sm:$0xff]
  %v320 = vld [vmem:[%s6 + $0x20] sm:$0xff]
  %v321 = vld [vmem:[%s6 + $0x28] sm:$0xff]
  %v322 = vld [vmem:[%s6 + $0x30] sm:$0xff]
  %v323 = vld [vmem:[%s6 + $0x38] sm:$0xff]
  %v324 = vld [vmem:[%s7] sm:$0xf]
  %vm331 = vcmask 1046528
  %v332 = vrot.slane %v310, 1
  %v333 = vrot.slane %v311, 1
  %v334 = vsel %vm331, %v332, %v333
  %v335 = vrot.slane %v312, 1
  %v336 = vsel %vm331, %v333, %v335
  %v337 = vrot.slane %v313, 1
  %v338 = vrot.slane %v314, 1
  %v339 = vsel %vm331, %v337, %v338
  %v340 = vrot.slane %v315, 1
  %v341 = vsel %vm331, %v338, %v340
  %vm346 = vcmask 1040384
  %vm347 = vcmask 1042434
  %vm348 = vmor %vm346, %vm347
  %vm349 = vcmask 1044484
  %vm350 = vmor %vm348, %vm349
  %vm351 = vcmask 1046534
  %vm352 = vmor %vm350, %vm351
  %v353 = vrot.slane %v241, 7
  %v354 = vrot.slane %v353, 2
  %v355 = vrot.slane %v249, 7
  %v356 = vsel %vm352, %v354, %v355
  %v357 = vrot.slane %v355, 2
  %v358 = vrot.slane %v248, 7
  %v359 = vsel %vm352, %v357, %v358
  %v360 = vrot.slane %v358, 2
  %v361 = vrot.slane %v250, 7
  %v362 = vsel %vm352, %v360, %v361
  %v363 = vrot.slane %v361, 2
  %v364 = vrot.slane %v258, 7
  %v365 = vsel %vm352, %v363, %v364
  %v366 = vrot.slane %v364, 2
  %v367 = vrot.slane %v266, 7
  %v368 = vsel %vm352, %v366, %v367
  %v369 = vrot.slane %v367, 2
  %v370 = vrot.slane %v265, 7
  %v371 = vsel %vm352, %v369, %v370
  %v372 = vrot.slane %v370, 2
  %v373 = vrot.slane %v267, 7
  %v374 = vsel %vm352, %v372, %v373
  %v375 = vrot.slane %v373, 2
  %v376 = vrot.slane %v275, 7
  %v377 = vsel %vm352, %v375, %v376
  %v378 = vrot.slane %v283, 7
  %v379 = vrot.slane %v378, 2
  %v380 = vrot.slane %v282, 7
  %v381 = vsel %vm352, %v379, %v380
  %v382 = vrot.slane %v380, 2
  %v383 = vrot.slane %v284, 7
  %v384 = vsel %vm352, %v382, %v383
  %v385 = vrot.slane %v383, 2
  %v386 = vrot.slane %v292, 7
  %v387 = vsel %vm352, %v385, %v386
  %v388 = vrot.slane %v386, 2
  %v389 = vrot.slane %v300, 7
  %v390 = vsel %vm352, %v388, %v389
  %v391 = vrot.slane %v389, 2
  %v392 = vrot.slane %v299, 7
  %v393 = vsel %vm352, %v391, %v392
  %v394 = vrot.slane %v392, 2
  %v395 = vrot.slane %v301, 7
  %v396 = vsel %vm352, %v394, %v395
  %v397 = vrot.slane %v395, 2
  %v398 = vrot.slane %v308, 7
  %v399 = vsel %vm352, %v397, %v398
  %v400 = vrot.slane %v398, 2
  %v401 = vrot.slane %v309, 7
  %v402 = vsel %vm352, %v400, %v401
  %vm403 = vcmask 1045504
  %v404 = vrot.slane %v310, 2
  %v405 = vrot.slane %v311, 2
  %v406 = vsel %vm403, %v404, %v405
  %v407 = vrot.slane %v312, 2
  %v408 = vsel %vm403, %v405, %v407
  %v409 = vrot.slane %v313, 2
  %v410 = vrot.slane %v314, 2
  %v411 = vsel %vm403, %v409, %v410
  %v412 = vrot.slane %v315, 2
  %v413 = vsel %vm403, %v410, %v412
  %v418 = vcombine.low %v241, %v249
  %v419 = vcombine.low %v248, %v250
  %v421 = vunpack.c.l.s4 1983009808
  %v422 = vunpack.c.0.s8 %v421
  %v423 = vlaneseq
  %v424 = vshrl.u32 %v423, 7
  %v425 = vsub.s32 %v422, %v424
  %v426 = vrot.slane %v418, %v425
  %v428 = vunpack.c.l.s4 1983009808
  %v429 = vunpack.c.0.s8 %v428
  %v430 = vlaneseq
  %v431 = vshrl.u32 %v430, 7
  %v432 = vsub.s32 %v429, %v431
  %v433 = vrot.slane %v419, %v432
  %v434 = vcombine.low %v426, %v433
  %v435 = vcombine.low %v258, %v266
  %v436 = vcombine.low %v265, %v267
  %v438 = vunpack.c.l.s4 1983009808
  %v439 = vunpack.c.0.s8 %v438
  %v440 = vlaneseq
  %v441 = vshrl.u32 %v440, 7
  %v442 = vsub.s32 %v439, %v441
  %v443 = vrot.slane %v435, %v442
  %v445 = vunpack.c.l.s4 1983009808
  %v446 = vunpack.c.0.s8 %v445
  %v447 = vlaneseq
  %v448 = vshrl.u32 %v447, 7
  %v449 = vsub.s32 %v446, %v448
  %v450 = vrot.slane %v436, %v449
  %v451 = vcombine.low %v443, %v450
  %v452 = vcombine.low %v283, %v282
  %v453 = vcombine.low %v284, %v292
  %v455 = vunpack.c.l.s4 1983009808
  %v456 = vunpack.c.0.s8 %v455
  %v457 = vlaneseq
  %v458 = vshrl.u32 %v457, 7
  %v459 = vsub.s32 %v456, %v458
  %v460 = vrot.slane %v452, %v459
  %v462 = vunpack.c.l.s4 1983009808
  %v463 = vunpack.c.0.s8 %v462
  %v464 = vlaneseq
  %v465 = vshrl.u32 %v464, 7
  %v466 = vsub.s32 %v463, %v465
  %v467 = vrot.slane %v453, %v466
  %v468 = vcombine.low %v460, %v467
  %v469 = vcombine.low %v300, %v299
  %v470 = vcombine.low %v301, %v308
  %v472 = vunpack.c.l.s4 1983009808
  %v473 = vunpack.c.0.s8 %v472
  %v474 = vlaneseq
  %v475 = vshrl.u32 %v474, 7
  %v476 = vsub.s32 %v473, %v475
  %v477 = vrot.slane %v469, %v476
  %v479 = vunpack.c.l.s4 1983009808
  %v480 = vunpack.c.0.s8 %v479
  %v481 = vlaneseq
  %v482 = vshrl.u32 %v481, 7
  %v483 = vsub.s32 %v480, %v482
  %v484 = vrot.slane %v470, %v483
  %v485 = vcombine.low %v477, %v484
  %486 = vrot.lane.b32.xlu0 %v434, 64
  %v487 = vpop.permute.xlu0 %486
  %488 = vrot.lane.b32.xlu0 %v451, 64
  %v489 = vpop.permute.xlu0 %488
  %490 = vrot.lane.b32.xlu0 %v468, 64
  %v491 = vpop.permute.xlu0 %490
  %492 = vrot.lane.b32.xlu0 %v485, 64
  %v493 = vpop.permute.xlu0 %492
  %v498 = vcombine.low %v356, %v359
  %v499 = vcombine.low %v362, %v365
  %v501 = vunpack.c.l.s4 1983009808
  %v502 = vunpack.c.0.s8 %v501
  %v503 = vlaneseq
  %v504 = vshrl.u32 %v503, 7
  %v505 = vsub.s32 %v502, %v504
  %v506 = vrot.slane %v498, %v505
  %v508 = vunpack.c.l.s4 1983009808
  %v509 = vunpack.c.0.s8 %v508
  %v510 = vlaneseq
  %v511 = vshrl.u32 %v510, 7
  %v512 = vsub.s32 %v509, %v511
  %v513 = vrot.slane %v499, %v512
  %v514 = vcombine.low %v506, %v513
  %v515 = vcombine.low %v368, %v371
  %v516 = vcombine.low %v374, %v377
  %v518 = vunpack.c.l.s4 1983009808
  %v519 = vunpack.c.0.s8 %v518
  %v520 = vlaneseq
  %v521 = vshrl.u32 %v520, 7
  %v522 = vsub.s32 %v519, %v521
  %v523 = vrot.slane %v515, %v522
  %v525 = vunpack.c.l.s4 1983009808
  %v526 = vunpack.c.0.s8 %v525
  %v527 = vlaneseq
  %v528 = vshrl.u32 %v527, 7
  %v529 = vsub.s32 %v526, %v528
  %v530 = vrot.slane %v516, %v529
  %v531 = vcombine.low %v523, %v530
  %v532 = vcombine.low %v381, %v384
  %v533 = vcombine.low %v387, %v390
  %v535 = vunpack.c.l.s4 1983009808
  %v536 = vunpack.c.0.s8 %v535
  %v537 = vlaneseq
  %v538 = vshrl.u32 %v537, 7
  %v539 = vsub.s32 %v536, %v538
  %v540 = vrot.slane %v532, %v539
  %v542 = vunpack.c.l.s4 1983009808
  %v543 = vunpack.c.0.s8 %v542
  %v544 = vlaneseq
  %v545 = vshrl.u32 %v544, 7
  %v546 = vsub.s32 %v543, %v545
  %v547 = vrot.slane %v533, %v546
  %v548 = vcombine.low %v540, %v547
  %v549 = vcombine.low %v393, %v396
  %v550 = vcombine.low %v399, %v402
  %v552 = vunpack.c.l.s4 1983009808
  %v553 = vunpack.c.0.s8 %v552
  %v554 = vlaneseq
  %v555 = vshrl.u32 %v554, 7
  %v556 = vsub.s32 %v553, %v555
  %v557 = vrot.slane %v549, %v556
  %v559 = vunpack.c.l.s4 1983009808
  %v560 = vunpack.c.0.s8 %v559
  %v561 = vlaneseq
  %v562 = vshrl.u32 %v561, 7
  %v563 = vsub.s32 %v560, %v562
  %v564 = vrot.slane %v550, %v563
  %v565 = vcombine.low %v557, %v564
  %566 = vrot.lane.b32.xlu0 %v514, 64
  %v567 = vpop.permute.xlu0 %566
  %568 = vrot.lane.b32.xlu0 %v531, 64
  %v569 = vpop.permute.xlu0 %568
  %570 = vrot.lane.b32.xlu0 %v548, 64
  %v571 = vpop.permute.xlu0 %570
  %572 = vrot.lane.b32.xlu0 %v565, 64
  %v573 = vpop.permute.xlu0 %572
  %v578 = vcombine.low %v249, %v248
  %v579 = vcombine.low %v250, %v258
  %v581 = vunpack.c.l.s4 1983009808
  %v582 = vunpack.c.0.s8 %v581
  %v583 = vlaneseq
  %v584 = vshrl.u32 %v583, 7
  %v585 = vsub.s32 %v582, %v584
  %v586 = vrot.slane %v578, %v585
  %v588 = vunpack.c.l.s4 1983009808
  %v589 = vunpack.c.0.s8 %v588
  %v590 = vlaneseq
  %v591 = vshrl.u32 %v590, 7
  %v592 = vsub.s32 %v589, %v591
  %v593 = vrot.slane %v579, %v592
  %v594 = vcombine.low %v586, %v593
  %v595 = vcombine.low %v266, %v265
  %v596 = vcombine.low %v267, %v275
  %v598 = vunpack.c.l.s4 1983009808
  %v599 = vunpack.c.0.s8 %v598
  %v600 = vlaneseq
  %v601 = vshrl.u32 %v600, 7
  %v602 = vsub.s32 %v599, %v601
  %v603 = vrot.slane %v595, %v602
  %v605 = vunpack.c.l.s4 1983009808
  %v606 = vunpack.c.0.s8 %v605
  %v607 = vlaneseq
  %v608 = vshrl.u32 %v607, 7
  %v609 = vsub.s32 %v606, %v608
  %v610 = vrot.slane %v596, %v609
  %v611 = vcombine.low %v603, %v610
  %v612 = vcombine.low %v282, %v284
  %v613 = vcombine.low %v292, %v300
  %v615 = vunpack.c.l.s4 1983009808
  %v616 = vunpack.c.0.s8 %v615
  %v617 = vlaneseq
  %v618 = vshrl.u32 %v617, 7
  %v619 = vsub.s32 %v616, %v618
  %v620 = vrot.slane %v612, %v619
  %v622 = vunpack.c.l.s4 1983009808
  %v623 = vunpack.c.0.s8 %v622
  %v624 = vlaneseq
  %v625 = vshrl.u32 %v624, 7
  %v626 = vsub.s32 %v623, %v625
  %v627 = vrot.slane %v613, %v626
  %v628 = vcombine.low %v620, %v627
  %v629 = vcombine.low %v299, %v301
  %v630 = vcombine.low %v308, %v309
  %v632 = vunpack.c.l.s4 1983009808
  %v633 = vunpack.c.0.s8 %v632
  %v634 = vlaneseq
  %v635 = vshrl.u32 %v634, 7
  %v636 = vsub.s32 %v633, %v635
  %v637 = vrot.slane %v629, %v636
  %v639 = vunpack.c.l.s4 1983009808
  %v640 = vunpack.c.0.s8 %v639
  %v641 = vlaneseq
  %v642 = vshrl.u32 %v641, 7
  %v643 = vsub.s32 %v640, %v642
  %v644 = vrot.slane %v630, %v643
  %v645 = vcombine.low %v637, %v644
  %646 = vrot.lane.b32.xlu0 %v594, 64
  %v647 = vpop.permute.xlu0 %646
  %648 = vrot.lane.b32.xlu0 %v611, 64
  %v649 = vpop.permute.xlu0 %648
  %650 = vrot.lane.b32.xlu0 %v628, 64
  %v651 = vpop.permute.xlu0 %650
  %652 = vrot.lane.b32.xlu0 %v645, 64
  %v653 = vpop.permute.xlu0 %652
  %vm658 = vcmask 523264
  %v659 = vsel %vm658, %v310, %v487
  %v660 = vsel %vm658, %v311, %v489
  %v661 = vsel %vm658, %v313, %v491
  %v662 = vsel %vm658, %v314, %v493
  %v663 = vsel %vm658, %v334, %v567
  %v664 = vsel %vm658, %v336, %v569
  %v665 = vsel %vm658, %v339, %v571
  %v666 = vsel %vm658, %v341, %v573
  %v667 = vsel %vm658, %v406, %v647
  %v668 = vsel %vm658, %v408, %v649
  %v669 = vsel %vm658, %v411, %v651
  %v670 = vsel %vm658, %v413, %v653
  %v671 = vpack.c.bf16 %v660, %v659
  %v672 = vpack.c.bf16 %v664, %v663
  %v673 = vpack.c.bf16 %v668, %v667
  %v674 = vpack.c.bf16 %v662, %v661
  %v675 = vpack.c.bf16 %v666, %v665
  %v676 = vpack.c.bf16 %v670, %v669
  %v677 = vld [vmem:[%s4] sm:$0xf]
  %v678 = vld [vmem:[%s4 + $0x4] sm:$0xf]
  %v679 = vld [vmem:[%s4 + $0x8] sm:$0xf]
  %v680 = vld [vmem:[%s4 + $0xc] sm:$0xf]
  %v681 = vld [vmem:[%s4 + $0x10] sm:$0xf]
  %v682 = vld [vmem:[%s4 + $0x14] sm:$0xf]
  %v683 = vld [vmem:[%s4 + $0x18] sm:$0xf]
  %v684 = vld [vmem:[%s4 + $0x1c] sm:$0xf]
  %v685 = vld [vmem:[%s4 + $0x20] sm:$0xf]
  %v686 = vld [vmem:[%s4 + $0x24] sm:$0xf]
  %v687 = vld [vmem:[%s4 + $0x28] sm:$0xf]
  %v688 = vld [vmem:[%s4 + $0x2c] sm:$0xf]
  %v689 = vld [vmem:[%s4 + $0x30] sm:$0xf]
  %v690 = vld [vmem:[%s4 + $0x34] sm:$0xf]
  %v691 = vld [vmem:[%s4 + $0x38] sm:$0xf]
  %v692 = vld [vmem:[%s4 + $0x3c] sm:$0xf]
  %v693 = vld [vmem:[%s4 + $0x40] sm:$0xf]
  %v694 = vld [vmem:[%s4 + $0x44] sm:$0xf]
  %v695 = vld [vmem:[%s4 + $0x48] sm:$0xf]
  %v696 = vld [vmem:[%s4 + $0x4c] sm:$0xf]
  %v697 = vld [vmem:[%s4 + $0x50] sm:$0xf]
  %v698 = vld [vmem:[%s4 + $0x54] sm:$0xf]
  %v699 = vld [vmem:[%s4 + $0x58] sm:$0xf]
  %v700 = vld [vmem:[%s4 + $0x5c] sm:$0xf]
  %v701 = vld [vmem:[%s4 + $0x60] sm:$0xf]
  %v702 = vld [vmem:[%s4 + $0x64] sm:$0xf]
  %v703 = vld [vmem:[%s4 + $0x68] sm:$0xf]
  %v704 = vld [vmem:[%s4 + $0x6c] sm:$0xf]
  %v705 = vld [vmem:[%s4 + $0x70] sm:$0xf]
  %v706 = vld [vmem:[%s4 + $0x74] sm:$0xf]
  %v707 = vld [vmem:[%s4 + $0x78] sm:$0xf]
  %v708 = vld [vmem:[%s4 + $0x7c] sm:$0xf]
  %v709 = vld [vmem:[%s4 + $0x80] sm:$0xf]
  %v710 = vld [vmem:[%s4 + $0x84] sm:$0xf]
  %v711 = vld [vmem:[%s4 + $0x88] sm:$0xf]
  %v712 = vld [vmem:[%s4 + $0x8c] sm:$0xf]
  %v713 = vld [vmem:[%s4 + $0x90] sm:$0xf]
  %v714 = vld [vmem:[%s4 + $0x94] sm:$0xf]
  %v715 = vld [vmem:[%s4 + $0x98] sm:$0xf]
  %v716 = vld [vmem:[%s4 + $0x9c] sm:$0xf]
  %v717 = vld [vmem:[%s4 + $0xa0] sm:$0xf]
  %v718 = vld [vmem:[%s4 + $0xa4] sm:$0xf]
  %v719 = vld [vmem:[%s4 + $0xa8] sm:$0xf]
  %v720 = vld [vmem:[%s4 + $0xac] sm:$0xf]
  %v721 = vld [vmem:[%s4 + $0xb0] sm:$0xf]
  %v722 = vld [vmem:[%s4 + $0xb4] sm:$0xf]
  %v723 = vld [vmem:[%s4 + $0xb8] sm:$0xf]
  %v724 = vld [vmem:[%s4 + $0xbc] sm:$0xf]
  %v773 = vunpack.c.l.b16 %v677
  %v774 = vunpack.c.l.b16 %v678
  %v775 = vunpack.c.l.b16 %v679
  %v776 = vunpack.c.l.b16 %v680
  %v777 = vunpack.c.l.b16 %v681
  %v778 = vunpack.c.l.b16 %v682
  %v779 = vunpack.c.l.b16 %v683
  %v780 = vunpack.c.l.b16 %v684
  %v781 = vunpack.c.l.b16 %v685
  %v782 = vunpack.c.l.b16 %v686
  %v783 = vunpack.c.l.b16 %v687
  %v784 = vunpack.c.l.b16 %v688
  %v785 = vunpack.c.l.b16 %v689
  %v786 = vunpack.c.l.b16 %v690
  %v787 = vunpack.c.l.b16 %v691
  %v788 = vunpack.c.l.b16 %v692
  %v789 = vunpack.c.l.b16 %v693
  %v790 = vunpack.c.l.b16 %v694
  %v791 = vunpack.c.l.b16 %v695
  %v792 = vunpack.c.l.b16 %v696
  %v793 = vunpack.c.l.b16 %v697
  %v794 = vunpack.c.l.b16 %v698
  %v795 = vunpack.c.l.b16 %v699
  %v796 = vunpack.c.l.b16 %v700
  %v797 = vunpack.c.l.b16 %v701
  %v798 = vunpack.c.l.b16 %v702
  %v799 = vunpack.c.l.b16 %v703
  %v800 = vunpack.c.l.b16 %v704
  %v801 = vunpack.c.l.b16 %v705
  %v802 = vunpack.c.l.b16 %v706
  %v803 = vunpack.c.l.b16 %v707
  %v804 = vunpack.c.l.b16 %v708
  %v805 = vunpack.c.l.b16 %v709
  %v806 = vunpack.c.l.b16 %v710
  %v807 = vunpack.c.l.b16 %v711
  %v808 = vunpack.c.l.b16 %v712
  %v809 = vunpack.c.l.b16 %v713
  %v810 = vunpack.c.l.b16 %v714
  %v811 = vunpack.c.l.b16 %v715
  %v812 = vunpack.c.l.b16 %v716
  %v813 = vunpack.c.l.b16 %v717
  %v814 = vunpack.c.l.b16 %v718
  %v815 = vunpack.c.l.b16 %v719
  %v816 = vunpack.c.l.b16 %v720
  %v817 = vunpack.c.l.b16 %v721
  %v818 = vunpack.c.l.b16 %v722
  %v819 = vunpack.c.l.b16 %v723
  %v820 = vunpack.c.l.b16 %v724
  %v821 = vpack.c.b16 %v774, %v773
  %v822 = vpack.c.b16 %v776, %v775
  %v823 = vpack.c.b16 %v778, %v777
  %v824 = vpack.c.b16 %v780, %v779
  %v825 = vpack.c.b16 %v782, %v781
  %v826 = vpack.c.b16 %v784, %v783
  %v827 = vpack.c.b16 %v786, %v785
  %v828 = vpack.c.b16 %v788, %v787
  %v829 = vpack.c.b16 %v790, %v789
  %v830 = vpack.c.b16 %v792, %v791
  %v831 = vpack.c.b16 %v794, %v793
  %v832 = vpack.c.b16 %v796, %v795
  %v833 = vpack.c.b16 %v798, %v797
  %v834 = vpack.c.b16 %v800, %v799
  %v835 = vpack.c.b16 %v802, %v801
  %v836 = vpack.c.b16 %v804, %v803
  %v837 = vpack.c.b16 %v806, %v805
  %v838 = vpack.c.b16 %v808, %v807
  %v839 = vpack.c.b16 %v810, %v809
  %v840 = vpack.c.b16 %v812, %v811
  %v841 = vpack.c.b16 %v814, %v813
  %v842 = vpack.c.b16 %v816, %v815
  %v843 = vpack.c.b16 %v818, %v817
  %v844 = vpack.c.b16 %v820, %v819
  %869 = vmatprep.subr.bf16.mxu0 0
  %870 = vmatpush1.bf16.msra.mxu0 %v821
  %871 = vmatprep.subr.bf16.mxu0 0
  %872 = vmatpush1.bf16.msra.mxu0 %v822
  %873 = vmatprep.subr.bf16.mxu0 0
  %874 = vmatpush1.bf16.msra.mxu0 %v823
  %875 = vmatprep.subr.bf16.mxu0 0
  %876 = vmatpush1.bf16.msra.mxu0 %v824
  %877 = vmatprep.subr.bf16.mxu0 0
  %878 = vmatpush1.bf16.msra.mxu0 %v825
  %879 = vmatprep.subr.bf16.mxu0 0
  %880 = vmatpush1.bf16.msra.mxu0 %v826
  %881 = vmatprep.subr.bf16.mxu0 0
  %882 = vmatpush1.bf16.msra.mxu0 %v827
  %883 = vmatprep.subr.bf16.mxu0 0
  %884 = vmatpush1.bf16.msra.mxu0 %v828
  %885 = vmatprep.subr.bf16.mxu0 0
  %886 = vmatpush1.bf16.msra.mxu0 %v829
  %887 = vmatprep.subr.bf16.mxu0 0
  %888 = vmatpush1.bf16.msra.mxu0 %v830
  %889 = vmatprep.subr.bf16.mxu0 0
  %890 = vmatpush1.bf16.msra.mxu0 %v831
  %891 = vmatprep.subr.bf16.mxu0 0
  %892 = vmatpush1.bf16.msra.mxu0 %v832
  %893 = vmatprep.subr.bf16.mxu0 0
  %894 = vmatpush1.bf16.msra.mxu0 %v833
  %895 = vmatprep.subr.bf16.mxu0 0
  %896 = vmatpush1.bf16.msra.mxu0 %v834
  %897 = vmatprep.subr.bf16.mxu0 0
  %898 = vmatpush1.bf16.msra.mxu0 %v835
  %899 = vmatprep.subr.bf16.mxu0 0
  %900 = vmatpush1.bf16.msra.mxu0 %v836
  %901 = vmatprep.mubr.bf16.mxu0 %v672
  %902 = vmatmul.mubr.bf16.gmra.mrb[0].mxu0 %v671
  %v903 = vpop.f32.mrb[0].mxu0
  %v904 = vadd.f32 0.0, %v903
  %v905 = vpop.f32.mrb[0].mxu0
  %v906 = vpop.f32.mrb[0].mxu0
  %v907 = vadd.f32 0.0, %v906
  %v908 = vpop.f32.mrb[0].mxu0
  %909 = vmatprep.mubr.bf16.mxu0 %v675
  %910 = vmatmul.mubr.bf16.gmra.mrb[0].mxu0 %v674
  %v911 = vpop.f32.mrb[0].mxu0
  %v912 = vadd.f32 0.0, %v911
  %v913 = vpop.f32.mrb[0].mxu0
  %v914 = vpop.f32.mrb[0].mxu0
  %v915 = vadd.f32 0.0, %v914
  %v916 = vpop.f32.mrb[0].mxu0
  %917 = vdwg.mxu0
  %918 = vmatprep.subr.bf16.mxu0 0
  %919 = vmatpush1.bf16.msra.mxu0 %v837
  %920 = vmatprep.subr.bf16.mxu0 0
  %921 = vmatpush1.bf16.msra.mxu0 %v838
  %922 = vmatprep.subr.bf16.mxu0 0
  %923 = vmatpush1.bf16.msra.mxu0 %v839
  %924 = vmatprep.subr.bf16.mxu0 0
  %925 = vmatpush1.bf16.msra.mxu0 %v840
  %926 = vmatprep.subr.bf16.mxu0 0
  %927 = vmatpush1.bf16.msra.mxu0 %v841
  %928 = vmatprep.subr.bf16.mxu0 0
  %929 = vmatpush1.bf16.msra.mxu0 %v842
  %930 = vmatprep.subr.bf16.mxu0 0
  %931 = vmatpush1.bf16.msra.mxu0 %v843
  %932 = vmatprep.subr.bf16.mxu0 0
  %933 = vmatpush1.bf16.msra.mxu0 %v844
  %934 = vmatprep.subr.bf16.mxu0 0
  %935 = vmatpush1.bf16.msra.mxu0 0
  %936 = vmatprep.subr.bf16.mxu0 0
  %937 = vmatpush1.bf16.msra.mxu0 0
  %938 = vmatprep.subr.bf16.mxu0 0
  %939 = vmatpush1.bf16.msra.mxu0 0
  %940 = vmatprep.subr.bf16.mxu0 0
  %941 = vmatpush1.bf16.msra.mxu0 0
  %942 = vmatprep.subr.bf16.mxu0 0
  %943 = vmatpush1.bf16.msra.mxu0 0
  %944 = vmatprep.subr.bf16.mxu0 0
  %945 = vmatpush1.bf16.msra.mxu0 0
  %946 = vmatprep.subr.bf16.mxu0 0
  %947 = vmatpush1.bf16.msra.mxu0 0
  %948 = vmatprep.subr.bf16.mxu0 0
  %949 = vmatpush1.bf16.msra.mxu0 0
  %950 = vmatprep.mubr.bf16.mxu0 0
  %951 = vmatmul.mubr.bf16.gmra.mrb[0].mxu0 %v673
  %v952 = vpop.f32.mrb[0].mxu0
  %v953 = vadd.f32 %v904, %v952
  %v954 = vpop.f32.mrb[0].mxu0
  %v955 = vpop.f32.mrb[0].mxu0
  %v956 = vadd.f32 %v907, %v955
  %v957 = vpop.f32.mrb[0].mxu0
  %958 = vmatprep.mubr.bf16.mxu0 0
  %959 = vmatmul.mubr.bf16.gmra.mrb[0].mxu0 %v676
  %v960 = vpop.f32.mrb[0].mxu0
  %v961 = vadd.f32 %v912, %v960
  %v962 = vpop.f32.mrb[0].mxu0
  %v963 = vpop.f32.mrb[0].mxu0
  %v964 = vadd.f32 %v915, %v963
  %v965 = vpop.f32.mrb[0].mxu0
  %966 = vdwg.mxu0
  %v968 = vsel %vm658, %v953, 0
  %v971 = vsel %vm658, %v956, 0
  %v974 = vsel %vm658, %v961, 0
  %v977 = vsel %vm658, %v964, 0
  %979 = vmatprep.subr.mxu0 0.0
  %980 = vmatpush1.msra.mxu0 %v316
  %981 = vmatprep.subr.mxu0 0.0
  %982 = vmatpush1.msra.mxu0 %v317
  %983 = vmatprep.subr.mxu0 0.0
  %984 = vmatpush1.msra.mxu0 %v318
  %985 = vmatprep.subr.mxu0 0.0
  %986 = vmatpush1.msra.mxu0 %v319
  %987 = vmatprep.subr.mxu0 0.0
  %988 = vmatpush1.msra.mxu0 %v320
  %989 = vmatprep.subr.mxu0 0.0
  %990 = vmatpush1.msra.mxu0 %v321
  %991 = vmatprep.subr.mxu0 0.0
  %992 = vmatpush1.msra.mxu0 %v322
  %993 = vmatprep.subr.mxu0 0.0
  %994 = vmatpush1.msra.mxu0 %v323
  %995 = vmatprep.subr.mxu0 0.0
  %996 = vmatpush1.msra.mxu0 0.0
  %997 = vmatprep.subr.mxu0 0.0
  %998 = vmatpush1.msra.mxu0 0.0
  %999 = vmatprep.subr.mxu0 0.0
  %1000 = vmatpush1.msra.mxu0 0.0
  %1001 = vmatprep.subr.mxu0 0.0
  %1002 = vmatpush1.msra.mxu0 0.0
  %1003 = vmatprep.subr.mxu0 0.0
  %1004 = vmatpush1.msra.mxu0 0.0
  %1005 = vmatprep.subr.mxu0 0.0
  %1006 = vmatpush1.msra.mxu0 0.0
  %1007 = vmatprep.subr.mxu0 0.0
  %1008 = vmatpush1.msra.mxu0 0.0
  %1009 = vmatprep.subr.mxu0 0.0
  %1010 = vmatpush1.msra.mxu0 0.0
  %1011 = vmatprep.subr.mxu0 0.0
  %1012 = vmatpush1.msra.mxu0 0.0
  %1013 = vmatprep.subr.mxu0 0.0
  %1014 = vmatpush1.msra.mxu0 0.0
  %1015 = vmatprep.subr.mxu0 0.0
  %1016 = vmatpush1.msra.mxu0 0.0
  %1017 = vmatprep.subr.mxu0 0.0
  %1018 = vmatpush1.msra.mxu0 0.0
  %1019 = vmatprep.subr.mxu0 0.0
  %1020 = vmatpush1.msra.mxu0 0.0
  %1021 = vmatprep.subr.mxu0 0.0
  %1022 = vmatpush1.msra.mxu0 0.0
  %1023 = vmatprep.subr.mxu0 0.0
  %1024 = vmatpush1.msra.mxu0 0.0
  %1025 = vmatprep.subr.mxu0 0.0
  %1026 = vmatpush1.msra.mxu0 0.0
  %1027 = vmatprep.subr.mxu0 0.0
  %1028 = vmatpush1.msra.mxu0 0.0
  %1029 = vmatprep.subr.mxu0 0.0
  %1030 = vmatpush1.msra.mxu0 0.0
  %1031 = vmatprep.subr.mxu0 0.0
  %1032 = vmatpush1.msra.mxu0 0.0
  %1033 = vmatprep.subr.mxu0 0.0
  %1034 = vmatpush1.msra.mxu0 0.0
  %1035 = vmatprep.subr.mxu0 0.0
  %1036 = vmatpush1.msra.mxu0 0.0
  %1037 = vmatprep.subr.mxu0 0.0
  %1038 = vmatpush1.msra.mxu0 0.0
  %1039 = vmatprep.subr.mxu0 0.0
  %1040 = vmatpush1.msra.mxu0 0.0
  %1041 = vmatprep.subr.mxu0 0.0
  %1042 = vmatpush1.msra.mxu0 0.0
  %1043 = vmatprep.mubr.f32.mxu0 0.0
  %1044 = vmatmul.mubr.f32.gmra.mrb[0].mxu0 %v968
  %v1045 = vpop.f32.mrb[0].mxu0
  %v1046 = vadd.f32 0.0, %v1045
  %v1047 = vpop.f32.mrb[0].mxu0
  %1048 = vmatprep.mubr.f32.mxu0 0.0
  %1049 = vmatmul.mubr.f32.gmra.mrb[0].mxu0 %v971
  %v1050 = vpop.f32.mrb[0].mxu0
  %v1051 = vadd.f32 0.0, %v1050
  %v1052 = vpop.f32.mrb[0].mxu0
  %1053 = vmatprep.mubr.f32.mxu0 0.0
  %1054 = vmatmul.mubr.f32.gmra.mrb[0].mxu0 %v974
  %v1055 = vpop.f32.mrb[0].mxu0
  %v1056 = vadd.f32 0.0, %v1055
  %v1057 = vpop.f32.mrb[0].mxu0
  %1058 = vmatprep.mubr.f32.mxu0 0.0
  %1059 = vmatmul.mubr.f32.gmra.mrb[0].mxu0 %v977
  %v1060 = vpop.f32.mrb[0].mxu0
  %v1061 = vadd.f32 0.0, %v1060
  %v1062 = vpop.f32.mrb[0].mxu0
  %1063 = vdwg.mxu0
  %v1064 = vsel %vm658, %v1046, 0.0
  %v1065 = vsel %vm658, %v1051, 0.0
  %v1066 = vadd.f32 %v1064, %v1065
  %v1067 = vsel %vm658, %v1056, 0.0
  %v1068 = vadd.f32 %v1066, %v1067
  %v1069 = vsel %vm658, %v1061, 0.0
  %v1070 = vadd.f32 %v1068, %v1069
  %v1071 = vrot.slane %v1070, 4
  %v1072 = vadd.f32 %v1070, %v1071
  %v1073 = vrot.slane %v1072, 2
  %v1074 = vadd.f32 %v1072, %v1073
  %v1075 = vrot.slane %v1074, 1
  %v1076 = vadd.f32 %v1074, %v1075
  %v1077 = vmul.f32 %v1076, 0.03125
  %v1078 = vmul.f32 %v953, %v953
  %v1079 = vmul.f32 %v956, %v956
  %v1080 = vmul.f32 %v961, %v961
  %v1081 = vmul.f32 %v964, %v964
  %v1083 = vsel %vm658, %v1078, 0
  %v1086 = vsel %vm658, %v1079, 0
  %v1089 = vsel %vm658, %v1080, 0
  %v1092 = vsel %vm658, %v1081, 0
  %1094 = vmatprep.subr.mxu0 0.0
  %1095 = vmatpush1.msra.mxu0 %v316
  %1096 = vmatprep.subr.mxu0 0.0
  %1097 = vmatpush1.msra.mxu0 %v317
  %1098 = vmatprep.subr.mxu0 0.0
  %1099 = vmatpush1.msra.mxu0 %v318
  %1100 = vmatprep.subr.mxu0 0.0
  %1101 = vmatpush1.msra.mxu0 %v319
  %1102 = vmatprep.subr.mxu0 0.0
  %1103 = vmatpush1.msra.mxu0 %v320
  %1104 = vmatprep.subr.mxu0 0.0
  %1105 = vmatpush1.msra.mxu0 %v321
  %1106 = vmatprep.subr.mxu0 0.0
  %1107 = vmatpush1.msra.mxu0 %v322
  %1108 = vmatprep.subr.mxu0 0.0
  %1109 = vmatpush1.msra.mxu0 %v323
  %1110 = vmatprep.subr.mxu0 0.0
  %1111 = vmatpush1.msra.mxu0 0.0
  %1112 = vmatprep.subr.mxu0 0.0
  %1113 = vmatpush1.msra.mxu0 0.0
  %1114 = vmatprep.subr.mxu0 0.0
  %1115 = vmatpush1.msra.mxu0 0.0
  %1116 = vmatprep.subr.mxu0 0.0
  %1117 = vmatpush1.msra.mxu0 0.0
  %1118 = vmatprep.subr.mxu0 0.0
  %1119 = vmatpush1.msra.mxu0 0.0
  %1120 = vmatprep.subr.mxu0 0.0
  %1121 = vmatpush1.msra.mxu0 0.0
  %1122 = vmatprep.subr.mxu0 0.0
  %1123 = vmatpush1.msra.mxu0 0.0
  %1124 = vmatprep.subr.mxu0 0.0
  %1125 = vmatpush1.msra.mxu0 0.0
  %1126 = vmatprep.subr.mxu0 0.0
  %1127 = vmatpush1.msra.mxu0 0.0
  %1128 = vmatprep.subr.mxu0 0.0
  %1129 = vmatpush1.msra.mxu0 0.0
  %1130 = vmatprep.subr.mxu0 0.0
  %1131 = vmatpush1.msra.mxu0 0.0
  %1132 = vmatprep.subr.mxu0 0.0
  %1133 = vmatpush1.msra.mxu0 0.0
  %1134 = vmatprep.subr.mxu0 0.0
  %1135 = vmatpush1.msra.mxu0 0.0
  %1136 = vmatprep.subr.mxu0 0.0
  %1137 = vmatpush1.msra.mxu0 0.0
  %1138 = vmatprep.subr.mxu0 0.0
  %1139 = vmatpush1.msra.mxu0 0.0
  %1140 = vmatprep.subr.mxu0 0.0
  %1141 = vmatpush1.msra.mxu0 0.0
  %1142 = vmatprep.subr.mxu0 0.0
  %1143 = vmatpush1.msra.mxu0 0.0
  %1144 = vmatprep.subr.mxu0 0.0
  %1145 = vmatpush1.msra.mxu0 0.0
  %1146 = vmatprep.subr.mxu0 0.0
  %1147 = vmatpush1.msra.mxu0 0.0
  %1148 = vmatprep.subr.mxu0 0.0
  %1149 = vmatpush1.msra.mxu0 0.0
  %1150 = vmatprep.subr.mxu0 0.0
  %1151 = vmatpush1.msra.mxu0 0.0
  %1152 = vmatprep.subr.mxu0 0.0
  %1153 = vmatpush1.msra.mxu0 0.0
  %1154 = vmatprep.subr.mxu0 0.0
  %1155 = vmatpush1.msra.mxu0 0.0
  %1156 = vmatprep.subr.mxu0 0.0
  %1157 = vmatpush1.msra.mxu0 0.0
  %1158 = vmatprep.mubr.f32.mxu0 0.0
  %1159 = vmatmul.mubr.f32.gmra.mrb[0].mxu0 %v1083
  %v1160 = vpop.f32.mrb[0].mxu0
  %v1161 = vadd.f32 0.0, %v1160
  %v1162 = vpop.f32.mrb[0].mxu0
  %1163 = vmatprep.mubr.f32.mxu0 0.0
  %1164 = vmatmul.mubr.f32.gmra.mrb[0].mxu0 %v1086
  %v1165 = vpop.f32.mrb[0].mxu0
  %v1166 = vadd.f32 0.0, %v1165
  %v1167 = vpop.f32.mrb[0].mxu0
  %1168 = vmatprep.mubr.f32.mxu0 0.0
  %1169 = vmatmul.mubr.f32.gmra.mrb[0].mxu0 %v1089
  %v1170 = vpop.f32.mrb[0].mxu0
  %v1171 = vadd.f32 0.0, %v1170
  %v1172 = vpop.f32.mrb[0].mxu0
  %1173 = vmatprep.mubr.f32.mxu0 0.0
  %1174 = vmatmul.mubr.f32.gmra.mrb[0].mxu0 %v1092
  %v1175 = vpop.f32.mrb[0].mxu0
  %v1176 = vadd.f32 0.0, %v1175
  %v1177 = vpop.f32.mrb[0].mxu0
  %1178 = vdwg.mxu0
  %v1179 = vsel %vm658, %v1161, 0.0
  %v1180 = vsel %vm658, %v1166, 0.0
  %v1181 = vadd.f32 %v1179, %v1180
  %v1182 = vsel %vm658, %v1171, 0.0
  %v1183 = vadd.f32 %v1181, %v1182
  %v1184 = vsel %vm658, %v1176, 0.0
  %v1185 = vadd.f32 %v1183, %v1184
  %v1186 = vrot.slane %v1185, 4
  %v1187 = vadd.f32 %v1185, %v1186
  %v1188 = vrot.slane %v1187, 2
  %v1189 = vadd.f32 %v1187, %v1188
  %v1190 = vrot.slane %v1189, 1
  %v1191 = vadd.f32 %v1189, %v1190
  %v1192 = vmul.f32 %v1191, 0.03125
  %v1193 = vmul.f32 %v1077, %v1077
  %v1194 = vsub.f32 %v1192, %v1193
  %v1195 = vadd.f32 %v1194, 1e-05
  %v1196 = vrsqrt.pop %v1195
  %v1197 = vmul.f32 %v324, %v1196
  %v1198 = vmul.f32 %v1077, %v1197
  %v1200 = vrot.slane %v1198, 7
  %v1202 = vsub.f32 %v324, %v1200
  %v1203 = vlaneseq
  %v1204 = vshrl.u32 %v1203, 7
  %v1205 = vsub.s32 0, %v1204
  %v1206 = vrot.slane %v1197, %v1205
  %v1207 = vmul.f32 %v953, %v1206
  %v1208 = vmul.f32 %v956, %v1206
  %v1209 = vmul.f32 %v961, %v1206
  %v1210 = vmul.f32 %v964, %v1206
  %v1211 = vlaneseq
  %v1212 = vshrl.u32 %v1211, 7
  %v1213 = vsub.s32 1, %v1212
  %v1214 = vrot.slane %v1202, %v1213
  %v1215 = vadd.f32 %v1207, %v1214
  %v1216 = vadd.f32 %v1208, %v1214
  %v1217 = vadd.f32 %v1209, %v1214
  %v1218 = vadd.f32 %v1210, %v1214
  %v1219 = vmax.f32 %v1215, 0.0
  %v1220 = vmax.f32 %v1216, 0.0
  %v1221 = vmax.f32 %v1217, 0.0
  %v1222 = vmax.f32 %v1218, 0.0
  %vm1223 = vcmask 516096
  %1224 = vst.msk [vmem:[#allocation2] sm:$0x1] %vm1223, 0.0
  %1225 = vst.msk [vmem:[#allocation2 + $0x18] sm:$0x1] %vm1223, 0.0
  %1226 = vst.msk [vmem:[#allocation2 + $0x11] sm:$0x1] %vm1223, 0.0
  %1227 = vst.msk [vmem:[#allocation2 + $0x29] sm:$0x1] %vm1223, 0.0
  %1228 = vst.msk [vmem:[#allocation2 + $0x1] sm:$0xff] %vm658, %v1219
  %1229 = vst.msk [vmem:[#allocation2 + $0x9] sm:$0xff] %vm658, %v1220
  %1230 = vst.msk [vmem:[#allocation2 + $0x19] sm:$0xff] %vm658, %v1221
  %1231 = vst.msk [vmem:[#allocation2 + $0x21] sm:$0xff] %vm658, %v1222
  %v1232 = vld [vmem:[#allocation2] sm:$0xff]
  %v1233 = vld [vmem:[#allocation2 + $0x8] sm:$0xff]
  %v1234 = vld [vmem:[#allocation2 + $0x10] sm:$0x3]
  %v1235 = vld [vmem:[#allocation2 + $0x18] sm:$0xff]
  %v1236 = vld [vmem:[#allocation2 + $0x20] sm:$0xff]
  %v1237 = vld [vmem:[#allocation2 + $0x28] sm:$0x3]
  %v1244 = vrot.slane %v1232, 1
  %v1245 = vrot.slane %v1233, 1
  %v1246 = vsel %vm331, %v1244, %v1245
  %v1247 = vrot.slane %v1234, 1
  %v1248 = vsel %vm331, %v1245, %v1247
  %v1249 = vrot.slane %v1235, 1
  %v1250 = vrot.slane %v1236, 1
  %v1251 = vsel %vm331, %v1249, %v1250
  %v1252 = vrot.slane %v1237, 1
  %v1253 = vsel %vm331, %v1250, %v1252
  %v1254 = vrot.slane %v1232, 2
  %v1255 = vrot.slane %v1233, 2
  %v1256 = vsel %vm403, %v1254, %v1255
  %v1257 = vrot.slane %v1234, 2
  %v1258 = vsel %vm403, %v1255, %v1257
  %v1259 = vrot.slane %v1235, 2
  %v1260 = vrot.slane %v1236, 2
  %v1261 = vsel %vm403, %v1259, %v1260
  %v1262 = vrot.slane %v1237, 2
  %v1263 = vsel %vm403, %v1260, %v1262
  %1268 = vrot.lane.b32.xlu0 %v1246, 64
  %v1269 = vpop.permute.xlu0 %1268
  %1270 = vrot.lane.b32.xlu0 %v1248, 64
  %v1271 = vpop.permute.xlu0 %1270
  %1272 = vrot.lane.b32.xlu0 %v1251, 64
  %v1273 = vpop.permute.xlu0 %1272
  %1274 = vrot.lane.b32.xlu0 %v1253, 64
  %v1275 = vpop.permute.xlu0 %1274
  %v1280 = vsel %vm658, %v1232, %v1269
  %v1281 = vsel %vm658, %v1233, %v1271
  %v1282 = vsel %vm658, %v1235, %v1273
  %v1283 = vsel %vm658, %v1236, %v1275
  %v1284 = vpack.c.bf16 %v1281, %v1280
  %v1285 = vpack.c.bf16 %v1258, %v1256
  %v1286 = vpack.c.bf16 %v1283, %v1282
  %v1287 = vpack.c.bf16 %v1263, %v1261
  %v1288 = vld [vmem:[%s5] sm:$0xf]
  %v1289 = vld [vmem:[%s5 + $0x4] sm:$0xf]
  %v1290 = vld [vmem:[%s5 + $0x8] sm:$0xf]
  %v1291 = vld [vmem:[%s5 + $0xc] sm:$0xf]
  %v1292 = vld [vmem:[%s5 + $0x10] sm:$0xf]
  %v1293 = vld [vmem:[%s5 + $0x14] sm:$0xf]
  %v1294 = vld [vmem:[%s5 + $0x18] sm:$0xf]
  %v1295 = vld [vmem:[%s5 + $0x1c] sm:$0xf]
  %v1296 = vld [vmem:[%s5 + $0x20] sm:$0xf]
  %v1297 = vld [vmem:[%s5 + $0x24] sm:$0xf]
  %v1298 = vld [vmem:[%s5 + $0x28] sm:$0xf]
  %v1299 = vld [vmem:[%s5 + $0x2c] sm:$0xf]
  %v1300 = vld [vmem:[%s5 + $0x30] sm:$0xf]
  %v1301 = vld [vmem:[%s5 + $0x34] sm:$0xf]
  %v1302 = vld [vmem:[%s5 + $0x38] sm:$0xf]
  %v1303 = vld [vmem:[%s5 + $0x3c] sm:$0xf]
  %v1304 = vld [vmem:[%s5 + $0x40] sm:$0xf]
  %v1305 = vld [vmem:[%s5 + $0x44] sm:$0xf]
  %v1306 = vld [vmem:[%s5 + $0x48] sm:$0xf]
  %v1307 = vld [vmem:[%s5 + $0x4c] sm:$0xf]
  %v1308 = vld [vmem:[%s5 + $0x50] sm:$0xf]
  %v1309 = vld [vmem:[%s5 + $0x54] sm:$0xf]
  %v1310 = vld [vmem:[%s5 + $0x58] sm:$0xf]
  %v1311 = vld [vmem:[%s5 + $0x5c] sm:$0xf]
  %v1336 = vunpack.c.l.b16 %v1288
  %v1337 = vunpack.c.l.b16 %v1289
  %v1338 = vunpack.c.l.b16 %v1290
  %v1339 = vunpack.c.l.b16 %v1291
  %v1340 = vunpack.c.l.b16 %v1292
  %v1341 = vunpack.c.l.b16 %v1293
  %v1342 = vunpack.c.l.b16 %v1294
  %v1343 = vunpack.c.l.b16 %v1295
  %v1344 = vunpack.c.l.b16 %v1296
  %v1345 = vunpack.c.l.b16 %v1297
  %v1346 = vunpack.c.l.b16 %v1298
  %v1347 = vunpack.c.l.b16 %v1299
  %v1348 = vunpack.c.l.b16 %v1300
  %v1349 = vunpack.c.l.b16 %v1301
  %v1350 = vunpack.c.l.b16 %v1302
  %v1351 = vunpack.c.l.b16 %v1303
  %v1352 = vunpack.c.l.b16 %v1304
  %v1353 = vunpack.c.l.b16 %v1305
  %v1354 = vunpack.c.l.b16 %v1306
  %v1355 = vunpack.c.l.b16 %v1307
  %v1356 = vunpack.c.l.b16 %v1308
  %v1357 = vunpack.c.l.b16 %v1309
  %v1358 = vunpack.c.l.b16 %v1310
  %v1359 = vunpack.c.l.b16 %v1311
  %v1360 = vpack.c.b16 %v1337, %v1336
  %v1361 = vpack.c.b16 %v1339, %v1338
  %v1362 = vpack.c.b16 %v1341, %v1340
  %v1363 = vpack.c.b16 %v1343, %v1342
  %v1364 = vpack.c.b16 %v1345, %v1344
  %v1365 = vpack.c.b16 %v1347, %v1346
  %v1366 = vpack.c.b16 %v1349, %v1348
  %v1367 = vpack.c.b16 %v1351, %v1350
  %v1368 = vpack.c.b16 %v1353, %v1352
  %v1369 = vpack.c.b16 %v1355, %v1354
  %v1370 = vpack.c.b16 %v1357, %v1356
  %v1371 = vpack.c.b16 %v1359, %v1358
  %v1385 = vsel %vm658, %v1285, 0
  %v1388 = vsel %vm658, %v1287, 0
  %1390 = vmatprep.subr.bf16.mxu0 0
  %1391 = vmatpush1.bf16.msra.mxu0 %v1360
  %1392 = vmatprep.subr.bf16.mxu0 0
  %1393 = vmatpush1.bf16.msra.mxu0 %v1361
  %1394 = vmatprep.subr.bf16.mxu0 0
  %1395 = vmatpush1.bf16.msra.mxu0 %v1362
  %1396 = vmatprep.subr.bf16.mxu0 0
  %1397 = vmatpush1.bf16.msra.mxu0 %v1363
  %1398 = vmatprep.subr.bf16.mxu0 0
  %1399 = vmatpush1.bf16.msra.mxu0 %v1364
  %1400 = vmatprep.subr.bf16.mxu0 0
  %1401 = vmatpush1.bf16.msra.mxu0 %v1365
  %1402 = vmatprep.subr.bf16.mxu0 0
  %1403 = vmatpush1.bf16.msra.mxu0 %v1366
  %1404 = vmatprep.subr.bf16.mxu0 0
  %1405 = vmatpush1.bf16.msra.mxu0 %v1367
  %1406 = vmatprep.subr.bf16.mxu0 0
  %1407 = vmatpush1.bf16.msra.mxu0 %v1368
  %1408 = vmatprep.subr.bf16.mxu0 0
  %1409 = vmatpush1.bf16.msra.mxu0 %v1369
  %1410 = vmatprep.subr.bf16.mxu0 0
  %1411 = vmatpush1.bf16.msra.mxu0 %v1370
  %1412 = vmatprep.subr.bf16.mxu0 0
  %1413 = vmatpush1.bf16.msra.mxu0 %v1371
  %1414 = vmatprep.subr.bf16.mxu0 0
  %1415 = vmatpush1.bf16.msra.mxu0 0
  %1416 = vmatprep.subr.bf16.mxu0 0
  %1417 = vmatpush1.bf16.msra.mxu0 0
  %1418 = vmatprep.subr.bf16.mxu0 0
  %1419 = vmatpush1.bf16.msra.mxu0 0
  %1420 = vmatprep.subr.bf16.mxu0 0
  %1421 = vmatpush1.bf16.msra.mxu0 0
  %1422 = vmatprep.mubr.bf16.mxu0 %v1385
  %1423 = vmatmul.mubr.bf16.gmra.mrb[0].mxu0 %v1284
  %v1424 = vpop.f32.mrb[0].mxu0
  %v1425 = vadd.f32 0.0, %v1424
  %v1426 = vpop.f32.mrb[0].mxu0
  %v1427 = vpop.f32.mrb[0].mxu0
  %v1428 = vadd.f32 0.0, %v1427
  %v1429 = vpop.f32.mrb[0].mxu0
  %1430 = vmatprep.mubr.bf16.mxu0 %v1388
  %1431 = vmatmul.mubr.bf16.gmra.mrb[0].mxu0 %v1286
  %v1432 = vpop.f32.mrb[0].mxu0
  %v1433 = vadd.f32 0.0, %v1432
  %v1434 = vpop.f32.mrb[0].mxu0
  %v1435 = vpop.f32.mrb[0].mxu0
  %v1436 = vadd.f32 0.0, %v1435
  %v1437 = vpop.f32.mrb[0].mxu0
  %1438 = vdwg.mxu0
  %v1440 = vsel %vm658, %v1425, 0
  %v1443 = vsel %vm658, %v1428, 0
  %v1446 = vsel %vm658, %v1433, 0
  %v1449 = vsel %vm658, %v1436, 0
  %1451 = vmatprep.subr.mxu0 0.0
  %1452 = vmatpush1.msra.mxu0 %v316
  %1453 = vmatprep.subr.mxu0 0.0
  %1454 = vmatpush1.msra.mxu0 %v317
  %1455 = vmatprep.subr.mxu0 0.0
  %1456 = vmatpush1.msra.mxu0 %v318
  %1457 = vmatprep.subr.mxu0 0.0
  %1458 = vmatpush1.msra.mxu0 %v319
  %1459 = vmatprep.subr.mxu0 0.0
  %1460 = vmatpush1.msra.mxu0 %v320
  %1461 = vmatprep.subr.mxu0 0.0
  %1462 = vmatpush1.msra.mxu0 %v321
  %1463 = vmatprep.subr.mxu0 0.0
  %1464 = vmatpush1.msra.mxu0 %v322
  %1465 = vmatprep.subr.mxu0 0.0
  %1466 = vmatpush1.msra.mxu0 %v323
  %1467 = vmatprep.subr.mxu0 0.0
  %1468 = vmatpush1.msra.mxu0 0.0
  %1469 = vmatprep.subr.mxu0 0.0
  %1470 = vmatpush1.msra.mxu0 0.0
  %1471 = vmatprep.subr.mxu0 0.0
  %1472 = vmatpush1.msra.mxu0 0.0
  %1473 = vmatprep.subr.mxu0 0.0
  %1474 = vmatpush1.msra.mxu0 0.0
  %1475 = vmatprep.subr.mxu0 0.0
  %1476 = vmatpush1.msra.mxu0 0.0
  %1477 = vmatprep.subr.mxu0 0.0
  %1478 = vmatpush1.msra.mxu0 0.0
  %1479 = vmatprep.subr.mxu0 0.0
  %1480 = vmatpush1.msra.mxu0 0.0
  %1481 = vmatprep.subr.mxu0 0.0
  %1482 = vmatpush1.msra.mxu0 0.0
  %1483 = vmatprep.subr.mxu0 0.0
  %1484 = vmatpush1.msra.mxu0 0.0
  %1485 = vmatprep.subr.mxu0 0.0
  %1486 = vmatpush1.msra.mxu0 0.0
  %1487 = vmatprep.subr.mxu0 0.0
  %1488 = vmatpush1.msra.mxu0 0.0
  %1489 = vmatprep.subr.mxu0 0.0
  %1490 = vmatpush1.msra.mxu0 0.0
  %1491 = vmatprep.subr.mxu0 0.0
  %1492 = vmatpush1.msra.mxu0 0.0
  %1493 = vmatprep.subr.mxu0 0.0
  %1494 = vmatpush1.msra.mxu0 0.0
  %1495 = vmatprep.subr.mxu0 0.0
  %1496 = vmatpush1.msra.mxu0 0.0
  %1497 = vmatprep.subr.mxu0 0.0
  %1498 = vmatpush1.msra.mxu0 0.0
  %1499 = vmatprep.subr.mxu0 0.0
  %1500 = vmatpush1.msra.mxu0 0.0
  %1501 = vmatprep.subr.mxu0 0.0
  %1502 = vmatpush1.msra.mxu0 0.0
  %1503 = vmatprep.subr.mxu0 0.0
  %1504 = vmatpush1.msra.mxu0 0.0
  %1505 = vmatprep.subr.mxu0 0.0
  %1506 = vmatpush1.msra.mxu0 0.0
  %1507 = vmatprep.subr.mxu0 0.0
  %1508 = vmatpush1.msra.mxu0 0.0
  %1509 = vmatprep.subr.mxu0 0.0
  %1510 = vmatpush1.msra.mxu0 0.0
  %1511 = vmatprep.subr.mxu0 0.0
  %1512 = vmatpush1.msra.mxu0 0.0
  %1513 = vmatprep.subr.mxu0 0.0
  %1514 = vmatpush1.msra.mxu0 0.0
  %1515 = vmatprep.mubr.f32.mxu0 0.0
  %1516 = vmatmul.mubr.f32.gmra.mrb[0].mxu0 %v1440
  %v1517 = vpop.f32.mrb[0].mxu0
  %v1518 = vadd.f32 0.0, %v1517
  %v1519 = vpop.f32.mrb[0].mxu0
  %1520 = vmatprep.mubr.f32.mxu0 0.0
  %1521 = vmatmul.mubr.f32.gmra.mrb[0].mxu0 %v1443
  %v1522 = vpop.f32.mrb[0].mxu0
  %v1523 = vadd.f32 0.0, %v1522
  %v1524 = vpop.f32.mrb[0].mxu0
  %1525 = vmatprep.mubr.f32.mxu0 0.0
  %1526 = vmatmul.mubr.f32.gmra.mrb[0].mxu0 %v1446
  %v1527 = vpop.f32.mrb[0].mxu0
  %v1528 = vadd.f32 0.0, %v1527
  %v1529 = vpop.f32.mrb[0].mxu0
  %1530 = vmatprep.mubr.f32.mxu0 0.0
  %1531 = vmatmul.mubr.f32.gmra.mrb[0].mxu0 %v1449
  %v1532 = vpop.f32.mrb[0].mxu0
  %v1533 = vadd.f32 0.0, %v1532
  %v1534 = vpop.f32.mrb[0].mxu0
  %1535 = vdwg.mxu0
  %v1536 = vsel %vm658, %v1518, 0.0
  %v1537 = vsel %vm658, %v1523, 0.0
  %v1538 = vadd.f32 %v1536, %v1537
  %v1539 = vsel %vm658, %v1528, 0.0
  %v1540 = vadd.f32 %v1538, %v1539
  %v1541 = vsel %vm658, %v1533, 0.0
  %v1542 = vadd.f32 %v1540, %v1541
  %v1543 = vrot.slane %v1542, 4
  %v1544 = vadd.f32 %v1542, %v1543
  %v1545 = vrot.slane %v1544, 2
  %v1546 = vadd.f32 %v1544, %v1545
  %v1547 = vrot.slane %v1546, 1
  %v1548 = vadd.f32 %v1546, %v1547
  %v1549 = vmul.f32 %v1548, 0.03125
  %v1550 = vmul.f32 %v1425, %v1425
  %v1551 = vmul.f32 %v1428, %v1428
  %v1552 = vmul.f32 %v1433, %v1433
  %v1553 = vmul.f32 %v1436, %v1436
  %v1555 = vsel %vm658, %v1550, 0
  %v1558 = vsel %vm658, %v1551, 0
  %v1561 = vsel %vm658, %v1552, 0
  %v1564 = vsel %vm658, %v1553, 0
  %1566 = vmatprep.subr.mxu0 0.0
  %1567 = vmatpush1.msra.mxu0 %v316
  %1568 = vmatprep.subr.mxu0 0.0
  %1569 = vmatpush1.msra.mxu0 %v317
  %1570 = vmatprep.subr.mxu0 0.0
  %1571 = vmatpush1.msra.mxu0 %v318
  %1572 = vmatprep.subr.mxu0 0.0
  %1573 = vmatpush1.msra.mxu0 %v319
  %1574 = vmatprep.subr.mxu0 0.0
  %1575 = vmatpush1.msra.mxu0 %v320
  %1576 = vmatprep.subr.mxu0 0.0
  %1577 = vmatpush1.msra.mxu0 %v321
  %1578 = vmatprep.subr.mxu0 0.0
  %1579 = vmatpush1.msra.mxu0 %v322
  %1580 = vmatprep.subr.mxu0 0.0
  %1581 = vmatpush1.msra.mxu0 %v323
  %1582 = vmatprep.subr.mxu0 0.0
  %1583 = vmatpush1.msra.mxu0 0.0
  %1584 = vmatprep.subr.mxu0 0.0
  %1585 = vmatpush1.msra.mxu0 0.0
  %1586 = vmatprep.subr.mxu0 0.0
  %1587 = vmatpush1.msra.mxu0 0.0
  %1588 = vmatprep.subr.mxu0 0.0
  %1589 = vmatpush1.msra.mxu0 0.0
  %1590 = vmatprep.subr.mxu0 0.0
  %1591 = vmatpush1.msra.mxu0 0.0
  %1592 = vmatprep.subr.mxu0 0.0
  %1593 = vmatpush1.msra.mxu0 0.0
  %1594 = vmatprep.subr.mxu0 0.0
  %1595 = vmatpush1.msra.mxu0 0.0
  %1596 = vmatprep.subr.mxu0 0.0
  %1597 = vmatpush1.msra.mxu0 0.0
  %1598 = vmatprep.subr.mxu0 0.0
  %1599 = vmatpush1.msra.mxu0 0.0
  %1600 = vmatprep.subr.mxu0 0.0
  %1601 = vmatpush1.msra.mxu0 0.0
  %1602 = vmatprep.subr.mxu0 0.0
  %1603 = vmatpush1.msra.mxu0 0.0
  %1604 = vmatprep.subr.mxu0 0.0
  %1605 = vmatpush1.msra.mxu0 0.0
  %1606 = vmatprep.subr.mxu0 0.0
  %1607 = vmatpush1.msra.mxu0 0.0
  %1608 = vmatprep.subr.mxu0 0.0
  %1609 = vmatpush1.msra.mxu0 0.0
  %1610 = vmatprep.subr.mxu0 0.0
  %1611 = vmatpush1.msra.mxu0 0.0
  %1612 = vmatprep.subr.mxu0 0.0
  %1613 = vmatpush1.msra.mxu0 0.0
  %1614 = vmatprep.subr.mxu0 0.0
  %1615 = vmatpush1.msra.mxu0 0.0
  %1616 = vmatprep.subr.mxu0 0.0
  %1617 = vmatpush1.msra.mxu0 0.0
  %1618 = vmatprep.subr.mxu0 0.0
  %1619 = vmatpush1.msra.mxu0 0.0
  %1620 = vmatprep.subr.mxu0 0.0
  %1621 = vmatpush1.msra.mxu0 0.0
  %1622 = vmatprep.subr.mxu0 0.0
  %1623 = vmatpush1.msra.mxu0 0.0
  %1624 = vmatprep.subr.mxu0 0.0
  %1625 = vmatpush1.msra.mxu0 0.0
  %1626 = vmatprep.subr.mxu0 0.0
  %1627 = vmatpush1.msra.mxu0 0.0
  %1628 = vmatprep.subr.mxu0 0.0
  %1629 = vmatpush1.msra.mxu0 0.0
  %1630 = vmatprep.mubr.f32.mxu0 0.0
  %1631 = vmatmul.mubr.f32.gmra.mrb[0].mxu0 %v1555
  %v1632 = vpop.f32.mrb[0].mxu0
  %v1633 = vadd.f32 0.0, %v1632
  %v1634 = vpop.f32.mrb[0].mxu0
  %1635 = vmatprep.mubr.f32.mxu0 0.0
  %1636 = vmatmul.mubr.f32.gmra.mrb[0].mxu0 %v1558
  %v1637 = vpop.f32.mrb[0].mxu0
  %v1638 = vadd.f32 0.0, %v1637
  %v1639 = vpop.f32.mrb[0].mxu0
  %1640 = vmatprep.mubr.f32.mxu0 0.0
  %1641 = vmatmul.mubr.f32.gmra.mrb[0].mxu0 %v1561
  %v1642 = vpop.f32.mrb[0].mxu0
  %v1643 = vadd.f32 0.0, %v1642
  %v1644 = vpop.f32.mrb[0].mxu0
  %1645 = vmatprep.mubr.f32.mxu0 0.0
  %1646 = vmatmul.mubr.f32.gmra.mrb[0].mxu0 %v1564
  %v1647 = vpop.f32.mrb[0].mxu0
  %v1648 = vadd.f32 0.0, %v1647
  %v1649 = vpop.f32.mrb[0].mxu0
  %1650 = vdwg.mxu0
  %v1651 = vsel %vm658, %v1633, 0.0
  %v1652 = vsel %vm658, %v1638, 0.0
  %v1653 = vadd.f32 %v1651, %v1652
  %v1654 = vsel %vm658, %v1643, 0.0
  %v1655 = vadd.f32 %v1653, %v1654
  %v1656 = vsel %vm658, %v1648, 0.0
  %v1657 = vadd.f32 %v1655, %v1656
  %v1658 = vrot.slane %v1657, 4
  %v1659 = vadd.f32 %v1657, %v1658
  %v1660 = vrot.slane %v1659, 2
  %v1661 = vadd.f32 %v1659, %v1660
  %v1662 = vrot.slane %v1661, 1
  %v1663 = vadd.f32 %v1661, %v1662
  %v1664 = vmul.f32 %v1663, 0.03125
  %v1665 = vmul.f32 %v1549, %v1549
  %v1666 = vsub.f32 %v1664, %v1665
  %v1667 = vadd.f32 %v1666, 1e-05
  %v1668 = vrsqrt.pop %v1667
  %v1669 = vmul.f32 %v324, %v1668
  %v1670 = vmul.f32 %v1549, %v1669
  %v1672 = vrot.slane %v1670, 7
  %v1674 = vsub.f32 %v324, %v1672
  %v1675 = vlaneseq
  %v1676 = vshrl.u32 %v1675, 7
  %v1677 = vsub.s32 2, %v1676
  %v1678 = vrot.slane %v1669, %v1677
  %v1679 = vmul.f32 %v1425, %v1678
  %v1680 = vmul.f32 %v1428, %v1678
  %v1681 = vmul.f32 %v1433, %v1678
  %v1682 = vmul.f32 %v1436, %v1678
  %v1683 = vlaneseq
  %v1684 = vshrl.u32 %v1683, 7
  %v1685 = vsub.s32 3, %v1684
  %v1686 = vrot.slane %v1674, %v1685
  %v1687 = vadd.f32 %v1679, %v1686
  %v1688 = vadd.f32 %v1680, %v1686
  %v1689 = vadd.f32 %v1681, %v1686
  %v1690 = vadd.f32 %v1682, %v1686
  %v1691 = vmax.f32 %v1687, 0.0
  %v1692 = vmax.f32 %v1688, 0.0
  %v1693 = vmax.f32 %v1689, 0.0
  %v1694 = vmax.f32 %v1690, 0.0
  %1695 = vst.msk [vmem:[%s8] sm:$0xff] %vm658, %v1691
  %1696 = vst.msk [vmem:[%s8 + $0x8] sm:$0xff] %vm658, %v1692
  %1697 = vst.msk [vmem:[%s8 + $0x10] sm:$0xff] %vm658, %v1693
  %1698 = vst.msk [vmem:[%s8 + $0x18] sm:$0xff] %vm658, %v1694
  // Predicated region
  $region34: #{up_forward.1} parent=0 // pred_check
    _
  $region35: #{up_forward.1} parent=0 // pred_check_branch
    %1700 = sbr.rel (0) target = $region37
  $region36: #{up_forward.1} parent=0 // pred_region
    _
  $region37: #{up_forward.1} parent=0 // pred_fallthru
    _
  // Predicated region
  $region38: #{up_forward.1} parent=0 // pred_check
    _
  $region39: #{up_forward.1} parent=0 // pred_check_branch
    %1702 = sbr.rel (0) target = $region41
  $region40: #{up_forward.1} parent=0 // pred_region
    _
  $region41: #{up_forward.1} parent=0 // pred_fallthru
    _

</llo_original>
